<compile_context>
chip_gen: v5e
topology: v5e:2x2
jax: 0.10.0
libtpu: 0.0.40
codegen_flags: <defaults>
</compile_context>

<pallas_src>
import functools
import math

import numpy as np
import jax
import jax.numpy as jnp
from jax import lax
from jax.experimental import pallas as pl
from jax.experimental.pallas import tpu as pltpu


# ----------------------------------------------------------------------------------
# Deterministic filter banks (same math as the PyTorch module's __init__).
# ----------------------------------------------------------------------------------
def get_gaussian_kernel(k=3, mu=0, sigma=1, normalize=True):
    gaussian_1d = np.linspace(-1, 1, k)
    x, y = np.meshgrid(gaussian_1d, gaussian_1d)
    distance = (x ** 2 + y ** 2) ** 0.5
    gaussian_2d = np.exp(-(distance - mu) ** 2 / (2 * sigma ** 2))
    gaussian_2d = gaussian_2d / (2 * np.pi * sigma ** 2)
    if normalize:
        gaussian_2d = gaussian_2d / np.sum(gaussian_2d)
    return gaussian_2d


def get_sobel_kernel(k=3):
    rng = np.linspace(-(k // 2), k // 2, k)
    x, y = np.meshgrid(rng, rng)
    numerator = x
    denominator = x ** 2 + y ** 2
    denominator[:, k // 2] = 1
    return numerator / denominator


# Analytic result of the cv2.getRotationMatrix2D / warpAffine rotation used in the
# original get_thin_kernels(): directional kernel i is +1 at the center and -1 at
# neighbour offset DIR_OFFSETS[i] (row, col); DIR_OFFSETS[i + 4] == -DIR_OFFSETS[i].
DIR_OFFSETS = ((0, 1), (-1, 1), (-1, 0), (-1, -1), (0, -1), (1, -1), (1, 0), (1, 1))

GAUSSIAN_2D = get_gaussian_kernel(3, 0, 1)
SOBEL_2D = get_sobel_kernel(3)
SOBEL_2D_T = SOBEL_2D.T.copy()


def _directional_kernels():
    ks = []
    for dr, dc in DIR_OFFSETS:
        k = np.zeros((3, 3))
        k[1, 1] = 1.0
        k[1 + dr, 1 + dc] = -1.0
        ks.append(k)
    return np.stack(ks)


# ----------------------------------------------------------------------------------
# Pallas kernel
# ----------------------------------------------------------------------------------
# The padded scratch holds the operand of the current 3x3 stencil at a tile-aligned
# offset (sublane 8, lane 128), so the store is an ordinary end-masked vector store and
# the 9 neighbour views are plain statically-offset slice loads (no unaligned stores,
# no matmuls).  The 1-element halo around the image stays zero -> conv zero padding.
_R0, _C0 = 8, 128


def _canny_kernel(img_ref, out_ref, pad_ref, *, low_threshold, high_threshold,
                  hysteresis):
    _, C, H, W = img_ref.shape
    f32 = jnp.float32

    # Border of the scratch provides the zero padding; the interior is fully
    # overwritten by every pad_store, so one clear per grid step is enough.
    pad_ref[...] = jnp.zeros_like(pad_ref)

    def pad_store(x):
        pad_ref[pl.ds(_R0, H), pl.ds(_C0, W)] = x

    def shifted(dr, dc):
        # y[i, j] = x[i + dr, j + dc] (zero outside), x = last pad_store'd image.
        return pad_ref[pl.ds(_R0 + dr, H), pl.ds(_C0 + dc, W)]

    def conv3x3(x, w):
        # PyTorch Conv2d semantics: cross-correlation, zero padding 1, no bias.
        # `x` must already be pad_store'd; the center tap reuses the in-register x.
        out = float(w[1, 1]) * x
        for r in range(3):
            for c in range(3):
                if (r, c) == (1, 1):
                    continue
                wv = float(w[r, c])
                if wv != 0.0:
                    out = out + wv * shifted(r - 1, c - 1)
        return out

    # ---- channel reduction + gaussian blur + sobel ----
    # Blur and sobel are linear, so summing channels first is exact up to fp
    # association and runs each conv exactly once instead of per channel.
    s = img_ref[0, 0].astype(f32)
    for c in range(1, C):
        s = s + img_ref[0, c].astype(f32)

    pad_store(s)
    blurred = conv3x3(s, GAUSSIAN_2D)

    pad_store(blurred)
    gx = jnp.zeros((H, W), f32)
    gy = jnp.zeros((H, W), f32)
    for r in range(3):
        for c in range(3):
            wx = float(SOBEL_2D[r, c])
            wy = float(SOBEL_2D_T[r, c])
            if wx == 0.0 and wy == 0.0:
                continue
            nb = blurred if (r, c) == (1, 1) else shifted(r - 1, c - 1)
            if wx != 0.0:
                gx = gx + wx * nb
            if wy != 0.0:
                gy = gy + wy * nb
    inv_c = 1.0 / float(C)
    gx = gx * inv_c
    gy = gy * inv_c

    mag = jnp.sqrt(gx * gx + gy * gy)

    # ---- orientation index ----
    # torch: idx = round((atan(gy/gx) * 360/pi + 180) / 45) % 8.  atan has no Mosaic
    # lowering; atan is monotone, so the rounded bin is fully determined by comparing
    # t = gy/gx against tan() bin edges (exact up to fp ties).
    t = gy / gx
    k = jnp.zeros((H, W), f32)
    for m in range(8):
        edge = math.tan((m - 3.5) * math.pi / 8.0)
        k = k + jnp.where(t > edge, 1.0, 0.0)
    k = jnp.where(k == 8.0, 0.0, k)                 # (...) % 8
    # 0/0 -> NaN in torch -> never equal to any bin; encode as -1 here.
    pos_idx = jnp.where(t != t, -1.0, k)

    # ---- directional filters fused into non-maximum suppression ----
    # Directional kernel i == identity minus a single shift, so each direction costs
    # one shifted read and one subtraction; nothing is kept live across iterations.
    pad_store(mag)
    thin = mag
    for i in range(4):
        dr, dc = DIR_OFFSETS[i]
        d_pos = mag - shifted(dr, dc)               # directional_filter[i]
        d_neg = mag - shifted(-dr, -dc)             # directional_filter[i + 4]
        is_oriented = jnp.logical_or(pos_idx == float(i), pos_idx == float(i + 4))
        is_max = jnp.minimum(d_pos, d_neg) > 0.0
        remove = jnp.logical_and(jnp.logical_not(is_max), is_oriented)
        thin = jnp.where(remove, 0.0, thin)

    # ---- optional double thresholding + hysteresis (static Python branches) ----
    if low_threshold is not None:
        low = thin > float(low_threshold)
        if high_threshold is not None:
            high = thin > float(high_threshold)
            thin = jnp.where(low, 0.5, 0.0) + jnp.where(high, 0.5, 0.0)
            if hysteresis:
                weak = jnp.where(thin == 0.5, 1.0, 0.0)
                # hysteresis kernel == 1.25 * ones(3,3): scaled 3x3 neighbourhood sum.
                pad_store(thin)
                nb_sum = thin
                for dr in (-1, 0, 1):
                    for dc in (-1, 0, 1):
                        if (dr, dc) == (0, 0):
                            continue
                        nb_sum = nb_sum + shifted(dr, dc)
                hyst = 1.25 * nb_sum
                weak_is_high = jnp.where(hyst > 1.0, 1.0, 0.0) * weak
                # TODO(synk): torch returns an int64 tensor on this branch; values
                # match, dtype kept float32 here.
                thin = jnp.where(high, 1.0, 0.0) + weak_is_high
        else:
            thin = jnp.where(low, 1.0, 0.0)

    out_ref[0, 0] = thin.astype(out_ref.dtype)


def canny_filter(img, low_threshold=None, high_threshold=None, hysteresis=True):
    """CannyFilter.forward.  img: (B, C, H, W) float -> (B, 1, H, W) float32."""
    img = jnp.asarray(img, jnp.float32)
    B, C, H, W = img.shape
    # Padded scratch: image stored at (8, 128); 1-pixel halo on every side stays zero.
    PH, PW = H + _R0 + 2, W + _C0 + 2

    kernel = functools.partial(
        _canny_kernel,
        low_threshold=low_threshold,
        high_threshold=high_threshold,
        hysteresis=hysteresis,
    )

    # Per-step VMEM footprint: double-buffered in/out blocks + padded scratch + a
    # handful of live (H, W) f32 intermediates; 2x headroom, capped at 64 MiB (v7x).
    step_bytes = 4 * (2 * C * H * W + 2 * H * W + PH * PW + 16 * H * W)
    vmem_limit = int(min(max(2 * step_bytes, 16 * 1024 * 1024), 64 * 1024 * 1024))

    # TODO(synk): for very large images (H,W >~ 1k on v7x) add H-stripe tiling with a
    # 4-row input halo to bound the per-step footprint; whole-image-per-step kept here.
    return pl.pallas_call(
        kernel,
        out_shape=jax.ShapeDtypeStruct((B, 1, H, W), jnp.float32),
        grid_spec=pltpu.PrefetchScalarGridSpec(
            num_scalar_prefetch=0,
            grid=(B,),
            in_specs=[pl.BlockSpec((1, C, H, W), lambda b: (b, 0, 0, 0))],
            out_specs=pl.BlockSpec((1, 1, H, W), lambda b: (b, 0, 0, 0)),
            scratch_shapes=[pltpu.VMEM((PH, PW), jnp.float32)],
        ),
        compiler_params=pltpu.CompilerParams(
            dimension_semantics=("parallel",),
            vmem_limit_bytes=vmem_limit,
        ),
    )(img)


# ----------------------------------------------------------------------------------
# Plain-JAX reference (default path, per-channel like the torch module), used only
# for a soft correctness check.
# ----------------------------------------------------------------------------------
def _conv_nchw(x, w):
    return lax.conv_general_dilated(
        x, w, window_strides=(1, 1), padding=((1, 1), (1, 1)),
        dimension_numbers=("NCHW", "OIHW", "NCHW"))


def canny_reference(img):
    img = jnp.asarray(img, jnp.float32)
    B, C, H, W = img.shape
    gk = jnp.asarray(GAUSSIAN_2D, jnp.float32)[None, None]
    sx = jnp.asarray(SOBEL_2D, jnp.float32)[None, None]
    sy = jnp.asarray(SOBEL_2D_T, jnp.float32)[None, None]
    dk = jnp.asarray(_directional_kernels(), jnp.float32)[:, None]
    gx = jnp.zeros((B, 1, H, W), jnp.float32)
    gy = jnp.zeros((B, 1, H, W), jnp.float32)
    for c in range(C):
        b = _conv_nchw(img[:, c:c + 1], gk)
        gx = gx + _conv_nchw(b, sx)
        gy = gy + _conv_nchw(b, sy)
    gx, gy = gx / C, gy / C
    mag = jnp.sqrt(gx ** 2 + gy ** 2)
    ori = jnp.arctan(gy / gx) * (360.0 / np.pi) + 180.0
    ori = jnp.round(ori / 45.0) * 45.0
    pos_idx = (ori / 45.0) % 8.0
    dirs = _conv_nchw(mag, dk)
    thin = mag
    for i in range(4):
        is_or = jnp.logical_or(pos_idx == i, pos_idx == i + 4)
        is_max = jnp.minimum(dirs[:, i:i + 1], dirs[:, i + 4:i + 5]) > 0.0
        thin = jnp.where(jnp.logical_and(jnp.logical_not(is_max), is_or), 0.0, thin)
    return thin


if __name__ == "__main__":
    key = jax.random.PRNGKey(0)
    x = jax.random.uniform(key, (2, 4, 16, 16), dtype=jnp.float32)

    out = jax.block_until_ready(canny_filter(x))                      # default path
    out_thr = jax.block_until_ready(                                  # thresholded path
        canny_filter(x, low_threshold=0.02, high_threshold=0.08, hysteresis=True))

    assert out.shape == (2, 1, 16, 16) and out_thr.shape == (2, 1, 16, 16)

    ref = jax.block_until_ready(canny_reference(x))
    # Soft check: allow rare tie flips from fp association (channel-sum reordering).
    frac_bad = float(jnp.mean(jnp.where(jnp.abs(out - ref) > 1e-3, 1.0, 0.0)))
    assert frac_bad < 0.01, f"mismatch fraction {frac_bad}"

    print("KERNEL_OK")
</pallas_src>

<mosaic_0001>
module attributes {stable_mosaic.version = 11 : i64} {
  func.func @_canny_kernel(%arg0: i32, %arg1: memref<1x4x16x16xf32, #tpu.memory_space<vmem>>, %arg2: memref<1x1x16x16xf32, #tpu.memory_space<vmem>>, %arg3: memref<26x146xf32, #tpu.memory_space<vmem>>) attributes {dimension_semantics = [#tpu.dimension_semantics<parallel>], iteration_bounds = array<i64: 2>, scalar_prefetch = 0 : i64, scratch_operands = 1 : i64, tpu.core_type = #tpu.core_type<tc>, window_params = [{transform_indices = @transform_0, window_bounds = array<i64: 1, 4, 16, 16>}, {transform_indices = @transform_1, window_bounds = array<i64: 1, 1, 16, 16>}]} {
    %cst = arith.constant 0.000000e+00 : f32
    %0 = vector.broadcast %cst : f32 to vector<26x146xf32>
    %c0 = arith.constant 0 : index
    %c0_0 = arith.constant 0 : index
    %1 = vector.load %arg3[%c0, %c0_0] : memref<26x146xf32, #tpu.memory_space<vmem>>, vector<26x146xf32>
    tpu.vector_store %arg3[%c0, %c0_0], %0 {strides = array<i32>} : memref<26x146xf32, #tpu.memory_space<vmem>>, vector<26x146xf32>,
    %c0_1 = arith.constant 0 : index
    %c0_2 = arith.constant 0 : index
    %c0_3 = arith.constant 0 : index
    %c0_4 = arith.constant 0 : index
    %2 = vector.load %arg1[%c0_1, %c0_2, %c0_3, %c0_4] : memref<1x4x16x16xf32, #tpu.memory_space<vmem>>, vector<1x1x16x16xf32>
    %3 = vector.shape_cast %2 : vector<1x1x16x16xf32> to vector<16x16xf32>
    %c0_5 = arith.constant 0 : index
    %c1 = arith.constant 1 : index
    %c0_6 = arith.constant 0 : index
    %c0_7 = arith.constant 0 : index
    %4 = vector.load %arg1[%c0_5, %c1, %c0_6, %c0_7] : memref<1x4x16x16xf32, #tpu.memory_space<vmem>>, vector<1x1x16x16xf32>
    %5 = vector.shape_cast %4 : vector<1x1x16x16xf32> to vector<16x16xf32>
    %6 = arith.addf %3, %5 : vector<16x16xf32>
    %c0_8 = arith.constant 0 : index
    %c2 = arith.constant 2 : index
    %c0_9 = arith.constant 0 : index
    %c0_10 = arith.constant 0 : index
    %7 = vector.load %arg1[%c0_8, %c2, %c0_9, %c0_10] : memref<1x4x16x16xf32, #tpu.memory_space<vmem>>, vector<1x1x16x16xf32>
    %8 = vector.shape_cast %7 : vector<1x1x16x16xf32> to vector<16x16xf32>
    %9 = arith.addf %6, %8 : vector<16x16xf32>
    %c0_11 = arith.constant 0 : index
    %c3 = arith.constant 3 : index
    %c0_12 = arith.constant 0 : index
    %c0_13 = arith.constant 0 : index
    %10 = vector.load %arg1[%c0_11, %c3, %c0_12, %c0_13] : memref<1x4x16x16xf32, #tpu.memory_space<vmem>>, vector<1x1x16x16xf32>
    %11 = vector.shape_cast %10 : vector<1x1x16x16xf32> to vector<16x16xf32>
    %12 = arith.addf %9, %11 : vector<16x16xf32>
    %c8 = arith.constant 8 : index
    %c128 = arith.constant 128 : index
    %13 = vector.load %arg3[%c8, %c128] : memref<26x146xf32, #tpu.memory_space<vmem>>, vector<16x16xf32>
    tpu.vector_store %arg3[%c8, %c128], %12 {strides = array<i32>} : memref<26x146xf32, #tpu.memory_space<vmem>>, vector<16x16xf32>,
    %cst_14 = arith.constant 0.204179958 : f32
    %14 = vector.broadcast %cst_14 : f32 to vector<16x16xf32>
    %15 = arith.mulf %14, %12 : vector<16x16xf32>
    %c7 = arith.constant 7 : index
    %c127 = arith.constant 127 : index
    %16 = vector.load %arg3[%c7, %c127] : memref<26x146xf32, #tpu.memory_space<vmem>>, vector<16x16xf32>
    %cst_15 = arith.constant 0.0751136094 : f32
    %17 = vector.broadcast %cst_15 : f32 to vector<16x16xf32>
    %18 = arith.mulf %17, %16 : vector<16x16xf32>
    %19 = arith.addf %15, %18 : vector<16x16xf32>
    %c7_16 = arith.constant 7 : index
    %c128_17 = arith.constant 128 : index
    %20 = vector.load %arg3[%c7_16, %c128_17] : memref<26x146xf32, #tpu.memory_space<vmem>>, vector<16x16xf32>
    %cst_18 = arith.constant 0.123841405 : f32
    %21 = vector.broadcast %cst_18 : f32 to vector<16x16xf32>
    %22 = arith.mulf %21, %20 : vector<16x16xf32>
    %23 = arith.addf %19, %22 : vector<16x16xf32>
    %c7_19 = arith.constant 7 : index
    %c129 = arith.constant 129 : index
    %24 = vector.load %arg3[%c7_19, %c129] : memref<26x146xf32, #tpu.memory_space<vmem>>, vector<16x16xf32>
    %cst_20 = arith.constant 0.0751136094 : f32
    %25 = vector.broadcast %cst_20 : f32 to vector<16x16xf32>
    %26 = arith.mulf %25, %24 : vector<16x16xf32>
    %27 = arith.addf %23, %26 : vector<16x16xf32>
    %c8_21 = arith.constant 8 : index
    %c127_22 = arith.constant 127 : index
    %28 = vector.load %arg3[%c8_21, %c127_22] : memref<26x146xf32, #tpu.memory_space<vmem>>, vector<16x16xf32>
    %cst_23 = arith.constant 0.123841405 : f32
    %29 = vector.broadcast %cst_23 : f32 to vector<16x16xf32>
    %30 = arith.mulf %29, %28 : vector<16x16xf32>
    %31 = arith.addf %27, %30 : vector<16x16xf32>
    %c8_24 = arith.constant 8 : index
    %c129_25 = arith.constant 129 : index
    %32 = vector.load %arg3[%c8_24, %c129_25] : memref<26x146xf32, #tpu.memory_space<vmem>>, vector<16x16xf32>
    %cst_26 = arith.constant 0.123841405 : f32
    %33 = vector.broadcast %cst_26 : f32 to vector<16x16xf32>
    %34 = arith.mulf %33, %32 : vector<16x16xf32>
    %35 = arith.addf %31, %34 : vector<16x16xf32>
    %c9 = arith.constant 9 : index
    %c127_27 = arith.constant 127 : index
    %36 = vector.load %arg3[%c9, %c127_27] : memref<26x146xf32, #tpu.memory_space<vmem>>, vector<16x16xf32>
    %cst_28 = arith.constant 0.0751136094 : f32
    %37 = vector.broadcast %cst_28 : f32 to vector<16x16xf32>
    %38 = arith.mulf %37, %36 : vector<16x16xf32>
    %39 = arith.addf %35, %38 : vector<16x16xf32>
    %c9_29 = arith.constant 9 : index
    %c128_30 = arith.constant 128 : index
    %40 = vector.load %arg3[%c9_29, %c128_30] : memref<26x146xf32, #tpu.memory_space<vmem>>, vector<16x16xf32>
    %cst_31 = arith.constant 0.123841405 : f32
    %41 = vector.broadcast %cst_31 : f32 to vector<16x16xf32>
    %42 = arith.mulf %41, %40 : vector<16x16xf32>
    %43 = arith.addf %39, %42 : vector<16x16xf32>
    %c9_32 = arith.constant 9 : index
    %c129_33 = arith.constant 129 : index
    %44 = vector.load %arg3[%c9_32, %c129_33] : memref<26x146xf32, #tpu.memory_space<vmem>>, vector<16x16xf32>
    %cst_34 = arith.constant 0.0751136094 : f32
    %45 = vector.broadcast %cst_34 : f32 to vector<16x16xf32>
    %46 = arith.mulf %45, %44 : vector<16x16xf32>
    %47 = arith.addf %43, %46 : vector<16x16xf32>
    %c8_35 = arith.constant 8 : index
    %c128_36 = arith.constant 128 : index
    %48 = vector.load %arg3[%c8_35, %c128_36] : memref<26x146xf32, #tpu.memory_space<vmem>>, vector<16x16xf32>
    tpu.vector_store %arg3[%c8_35, %c128_36], %47 {strides = array<i32>} : memref<26x146xf32, #tpu.memory_space<vmem>>, vector<16x16xf32>,
    %cst_37 = arith.constant 0.000000e+00 : f32
    %49 = vector.broadcast %cst_37 : f32 to vector<16x16xf32>
    %cst_38 = arith.constant 0.000000e+00 : f32
    %50 = vector.broadcast %cst_38 : f32 to vector<16x16xf32>
    %c7_39 = arith.constant 7 : index
    %c127_40 = arith.constant 127 : index
    %51 = vector.load %arg3[%c7_39, %c127_40] : memref<26x146xf32, #tpu.memory_space<vmem>>, vector<16x16xf32>
    %cst_41 = arith.constant -5.000000e-01 : f32
    %52 = vector.broadcast %cst_41 : f32 to vector<16x16xf32>
    %53 = arith.mulf %52, %51 : vector<16x16xf32>
    %54 = arith.addf %49, %53 : vector<16x16xf32>
    %cst_42 = arith.constant -5.000000e-01 : f32
    %55 = vector.broadcast %cst_42 : f32 to vector<16x16xf32>
    %56 = arith.mulf %55, %51 : vector<16x16xf32>
    %57 = arith.addf %50, %56 : vector<16x16xf32>
    %c7_43 = arith.constant 7 : index
    %c128_44 = arith.constant 128 : index
    %58 = vector.load %arg3[%c7_43, %c128_44] : memref<26x146xf32, #tpu.memory_space<vmem>>, vector<16x16xf32>
    %cst_45 = arith.constant -1.000000e+00 : f32
    %59 = vector.broadcast %cst_45 : f32 to vector<16x16xf32>
    %60 = arith.mulf %59, %58 : vector<16x16xf32>
    %61 = arith.addf %57, %60 : vector<16x16xf32>
    %c7_46 = arith.constant 7 : index
    %c129_47 = arith.constant 129 : index
    %62 = vector.load %arg3[%c7_46, %c129_47] : memref<26x146xf32, #tpu.memory_space<vmem>>, vector<16x16xf32>
    %cst_48 = arith.constant 5.000000e-01 : f32
    %63 = vector.broadcast %cst_48 : f32 to vector<16x16xf32>
    %64 = arith.mulf %63, %62 : vector<16x16xf32>
    %65 = arith.addf %54, %64 : vector<16x16xf32>
    %cst_49 = arith.constant -5.000000e-01 : f32
    %66 = vector.broadcast %cst_49 : f32 to vector<16x16xf32>
    %67 = arith.mulf %66, %62 : vector<16x16xf32>
    %68 = arith.addf %61, %67 : vector<16x16xf32>
    %c8_50 = arith.constant 8 : index
    %c127_51 = arith.constant 127 : index
    %69 = vector.load %arg3[%c8_50, %c127_51] : memref<26x146xf32, #tpu.memory_space<vmem>>, vector<16x16xf32>
    %cst_52 = arith.constant -1.000000e+00 : f32
    %70 = vector.broadcast %cst_52 : f32 to vector<16x16xf32>
    %71 = arith.mulf %70, %69 : vector<16x16xf32>
    %72 = arith.addf %65, %71 : vector<16x16xf32>
    %c8_53 = arith.constant 8 : index
    %c129_54 = arith.constant 129 : index
    %73 = vector.load %arg3[%c8_53, %c129_54] : memref<26x146xf32, #tpu.memory_space<vmem>>, vector<16x16xf32>
    %cst_55 = arith.constant 1.000000e+00 : f32
    %74 = vector.broadcast %cst_55 : f32 to vector<16x16xf32>
    %75 = arith.mulf %74, %73 : vector<16x16xf32>
    %76 = arith.addf %72, %75 : vector<16x16xf32>
    %c9_56 = arith.constant 9 : index
    %c127_57 = arith.constant 127 : index
    %77 = vector.load %arg3[%c9_56, %c127_57] : memref<26x146xf32, #tpu.memory_space<vmem>>, vector<16x16xf32>
    %cst_58 = arith.constant -5.000000e-01 : f32
    %78 = vector.broadcast %cst_58 : f32 to vector<16x16xf32>
    %79 = arith.mulf %78, %77 : vector<16x16xf32>
    %80 = arith.addf %76, %79 : vector<16x16xf32>
    %cst_59 = arith.constant 5.000000e-01 : f32
    %81 = vector.broadcast %cst_59 : f32 to vector<16x16xf32>
    %82 = arith.mulf %81, %77 : vector<16x16xf32>
    %83 = arith.addf %68, %82 : vector<16x16xf32>
    %c9_60 = arith.constant 9 : index
    %c128_61 = arith.constant 128 : index
    %84 = vector.load %arg3[%c9_60, %c128_61] : memref<26x146xf32, #tpu.memory_space<vmem>>, vector<16x16xf32>
    %cst_62 = arith.constant 1.000000e+00 : f32
    %85 = vector.broadcast %cst_62 : f32 to vector<16x16xf32>
    %86 = arith.mulf %85, %84 : vector<16x16xf32>
    %87 = arith.addf %83, %86 : vector<16x16xf32>
    %c9_63 = arith.constant 9 : index
    %c129_64 = arith.constant 129 : index
    %88 = vector.load %arg3[%c9_63, %c129_64] : memref<26x146xf32, #tpu.memory_space<vmem>>, vector<16x16xf32>
    %cst_65 = arith.constant 5.000000e-01 : f32
    %89 = vector.broadcast %cst_65 : f32 to vector<16x16xf32>
    %90 = arith.mulf %89, %88 : vector<16x16xf32>
    %91 = arith.addf %80, %90 : vector<16x16xf32>
    %cst_66 = arith.constant 5.000000e-01 : f32
    %92 = vector.broadcast %cst_66 : f32 to vector<16x16xf32>
    %93 = arith.mulf %92, %88 : vector<16x16xf32>
    %94 = arith.addf %87, %93 : vector<16x16xf32>
    %cst_67 = arith.constant 2.500000e-01 : f32
    %95 = vector.broadcast %cst_67 : f32 to vector<16x16xf32>
    %96 = arith.mulf %91, %95 : vector<16x16xf32>
    %cst_68 = arith.constant 2.500000e-01 : f32
    %97 = vector.broadcast %cst_68 : f32 to vector<16x16xf32>
    %98 = arith.mulf %94, %97 : vector<16x16xf32>
    %99 = arith.mulf %96, %96 : vector<16x16xf32>
    %100 = arith.mulf %98, %98 : vector<16x16xf32>
    %101 = arith.addf %99, %100 : vector<16x16xf32>
    %102 = math.sqrt %101 : vector<16x16xf32>
    %103 = arith.divf %98, %96 : vector<16x16xf32>
    %cst_69 = arith.constant 0.000000e+00 : f32
    %104 = vector.broadcast %cst_69 : f32 to vector<16x16xf32>
    %cst_70 = arith.constant -5.02733946 : f32
    %105 = vector.broadcast %cst_70 : f32 to vector<16x16xf32>
    %106 = arith.cmpf ogt, %103, %105 : vector<16x16xf32>
    %cst_71 = arith.constant 1.000000e+00 : f32
    %cst_72 = arith.constant 0.000000e+00 : f32
    %107 = vector.broadcast %cst_71 : f32 to vector<16x16xf32>
    %108 = vector.broadcast %cst_72 : f32 to vector<16x16xf32>
    %109 = arith.select %106, %107, %108 : vector<16x16xi1>, vector<16x16xf32>
    %110 = arith.addf %104, %109 : vector<16x16xf32>
    %cst_73 = arith.constant -1.49660575 : f32
    %111 = vector.broadcast %cst_73 : f32 to vector<16x16xf32>
    %112 = arith.cmpf ogt, %103, %111 : vector<16x16xf32>
    %cst_74 = arith.constant 1.000000e+00 : f32
    %cst_75 = arith.constant 0.000000e+00 : f32
    %113 = vector.broadcast %cst_74 : f32 to vector<16x16xf32>
    %114 = vector.broadcast %cst_75 : f32 to vector<16x16xf32>
    %115 = arith.select %112, %113, %114 : vector<16x16xi1>, vector<16x16xf32>
    %116 = arith.addf %110, %115 : vector<16x16xf32>
    %cst_76 = arith.constant -0.668178617 : f32
    %117 = vector.broadcast %cst_76 : f32 to vector<16x16xf32>
    %118 = arith.cmpf ogt, %103, %117 : vector<16x16xf32>
    %cst_77 = arith.constant 1.000000e+00 : f32
    %cst_78 = arith.constant 0.000000e+00 : f32
    %119 = vector.broadcast %cst_77 : f32 to vector<16x16xf32>
    %120 = vector.broadcast %cst_78 : f32 to vector<16x16xf32>
    %121 = arith.select %118, %119, %120 : vector<16x16xi1>, vector<16x16xf32>
    %122 = arith.addf %116, %121 : vector<16x16xf32>
    %cst_79 = arith.constant -0.198912367 : f32
    %123 = vector.broadcast %cst_79 : f32 to vector<16x16xf32>
    %124 = arith.cmpf ogt, %103, %123 : vector<16x16xf32>
    %cst_80 = arith.constant 1.000000e+00 : f32
    %cst_81 = arith.constant 0.000000e+00 : f32
    %125 = vector.broadcast %cst_80 : f32 to vector<16x16xf32>
    %126 = vector.broadcast %cst_81 : f32 to vector<16x16xf32>
    %127 = arith.select %124, %125, %126 : vector<16x16xi1>, vector<16x16xf32>
    %128 = arith.addf %122, %127 : vector<16x16xf32>
    %cst_82 = arith.constant 0.198912367 : f32
    %129 = vector.broadcast %cst_82 : f32 to vector<16x16xf32>
    %130 = arith.cmpf ogt, %103, %129 : vector<16x16xf32>
    %cst_83 = arith.constant 1.000000e+00 : f32
    %cst_84 = arith.constant 0.000000e+00 : f32
    %131 = vector.broadcast %cst_83 : f32 to vector<16x16xf32>
    %132 = vector.broadcast %cst_84 : f32 to vector<16x16xf32>
    %133 = arith.select %130, %131, %132 : vector<16x16xi1>, vector<16x16xf32>
    %134 = arith.addf %128, %133 : vector<16x16xf32>
    %cst_85 = arith.constant 0.668178617 : f32
    %135 = vector.broadcast %cst_85 : f32 to vector<16x16xf32>
    %136 = arith.cmpf ogt, %103, %135 : vector<16x16xf32>
    %cst_86 = arith.constant 1.000000e+00 : f32
    %cst_87 = arith.constant 0.000000e+00 : f32
    %137 = vector.broadcast %cst_86 : f32 to vector<16x16xf32>
    %138 = vector.broadcast %cst_87 : f32 to vector<16x16xf32>
    %139 = arith.select %136, %137, %138 : vector<16x16xi1>, vector<16x16xf32>
    %140 = arith.addf %134, %139 : vector<16x16xf32>
    %cst_88 = arith.constant 1.49660575 : f32
    %141 = vector.broadcast %cst_88 : f32 to vector<16x16xf32>
    %142 = arith.cmpf ogt, %103, %141 : vector<16x16xf32>
    %cst_89 = arith.constant 1.000000e+00 : f32
    %cst_90 = arith.constant 0.000000e+00 : f32
    %143 = vector.broadcast %cst_89 : f32 to vector<16x16xf32>
    %144 = vector.broadcast %cst_90 : f32 to vector<16x16xf32>
    %145 = arith.select %142, %143, %144 : vector<16x16xi1>, vector<16x16xf32>
    %146 = arith.addf %140, %145 : vector<16x16xf32>
    %cst_91 = arith.constant 5.02733946 : f32
    %147 = vector.broadcast %cst_91 : f32 to vector<16x16xf32>
    %148 = arith.cmpf ogt, %103, %147 : vector<16x16xf32>
    %cst_92 = arith.constant 1.000000e+00 : f32
    %cst_93 = arith.constant 0.000000e+00 : f32
    %149 = vector.broadcast %cst_92 : f32 to vector<16x16xf32>
    %150 = vector.broadcast %cst_93 : f32 to vector<16x16xf32>
    %151 = arith.select %148, %149, %150 : vector<16x16xi1>, vector<16x16xf32>
    %152 = arith.addf %146, %151 : vector<16x16xf32>
    %cst_94 = arith.constant 8.000000e+00 : f32
    %153 = vector.broadcast %cst_94 : f32 to vector<16x16xf32>
    %154 = arith.cmpf oeq, %152, %153 : vector<16x16xf32>
    %cst_95 = arith.constant 0.000000e+00 : f32
    %155 = vector.broadcast %cst_95 : f32 to vector<16x16xf32>
    %156 = arith.select %154, %155, %152 : vector<16x16xi1>, vector<16x16xf32>
    %157 = arith.cmpf one, %103, %103 : vector<16x16xf32>
    %cst_96 = arith.constant -1.000000e+00 : f32
    %158 = vector.broadcast %cst_96 : f32 to vector<16x16xf32>
    %159 = arith.select %157, %158, %156 : vector<16x16xi1>, vector<16x16xf32>
    %c8_97 = arith.constant 8 : index
    %c128_98 = arith.constant 128 : index
    %160 = vector.load %arg3[%c8_97, %c128_98] : memref<26x146xf32, #tpu.memory_space<vmem>>, vector<16x16xf32>
    tpu.vector_store %arg3[%c8_97, %c128_98], %102 {strides = array<i32>} : memref<26x146xf32, #tpu.memory_space<vmem>>, vector<16x16xf32>,
    %c8_99 = arith.constant 8 : index
    %c129_100 = arith.constant 129 : index
    %161 = vector.load %arg3[%c8_99, %c129_100] : memref<26x146xf32, #tpu.memory_space<vmem>>, vector<16x16xf32>
    %162 = arith.subf %102, %161 : vector<16x16xf32>
    %c8_101 = arith.constant 8 : index
    %c127_102 = arith.constant 127 : index
    %163 = vector.load %arg3[%c8_101, %c127_102] : memref<26x146xf32, #tpu.memory_space<vmem>>, vector<16x16xf32>
    %164 = arith.subf %102, %163 : vector<16x16xf32>
    %cst_103 = arith.constant 0.000000e+00 : f32
    %165 = vector.broadcast %cst_103 : f32 to vector<16x16xf32>
    %166 = arith.cmpf oeq, %159, %165 : vector<16x16xf32>
    %cst_104 = arith.constant 4.000000e+00 : f32
    %167 = vector.broadcast %cst_104 : f32 to vector<16x16xf32>
    %168 = arith.cmpf oeq, %159, %167 : vector<16x16xf32>
    %169 = arith.ori %166, %168 : vector<16x16xi1>
    %170 = arith.minimumf %162, %164 : vector<16x16xf32>
    %cst_105 = arith.constant 0.000000e+00 : f32
    %171 = vector.broadcast %cst_105 : f32 to vector<16x16xf32>
    %172 = arith.cmpf ogt, %170, %171 : vector<16x16xf32>
    %cst_106 = arith.constant dense<true> : vector<16x16xi1>
    %173 = arith.xori %172, %cst_106 : vector<16x16xi1>
    %174 = arith.andi %173, %169 : vector<16x16xi1>
    %cst_107 = arith.constant 0.000000e+00 : f32
    %175 = vector.broadcast %cst_107 : f32 to vector<16x16xf32>
    %176 = arith.select %174, %175, %102 : vector<16x16xi1>, vector<16x16xf32>
    %c7_108 = arith.constant 7 : index
    %c129_109 = arith.constant 129 : index
    %177 = vector.load %arg3[%c7_108, %c129_109] : memref<26x146xf32, #tpu.memory_space<vmem>>, vector<16x16xf32>
    %178 = arith.subf %102, %177 : vector<16x16xf32>
    %c9_110 = arith.constant 9 : index
    %c127_111 = arith.constant 127 : index
    %179 = vector.load %arg3[%c9_110, %c127_111] : memref<26x146xf32, #tpu.memory_space<vmem>>, vector<16x16xf32>
    %180 = arith.subf %102, %179 : vector<16x16xf32>
    %cst_112 = arith.constant 1.000000e+00 : f32
    %181 = vector.broadcast %cst_112 : f32 to vector<16x16xf32>
    %182 = arith.cmpf oeq, %159, %181 : vector<16x16xf32>
    %cst_113 = arith.constant 5.000000e+00 : f32
    %183 = vector.broadcast %cst_113 : f32 to vector<16x16xf32>
    %184 = arith.cmpf oeq, %159, %183 : vector<16x16xf32>
    %185 = arith.ori %182, %184 : vector<16x16xi1>
    %186 = arith.minimumf %178, %180 : vector<16x16xf32>
    %cst_114 = arith.constant 0.000000e+00 : f32
    %187 = vector.broadcast %cst_114 : f32 to vector<16x16xf32>
    %188 = arith.cmpf ogt, %186, %187 : vector<16x16xf32>
    %cst_115 = arith.constant dense<true> : vector<16x16xi1>
    %189 = arith.xori %188, %cst_115 : vector<16x16xi1>
    %190 = arith.andi %189, %185 : vector<16x16xi1>
    %cst_116 = arith.constant 0.000000e+00 : f32
    %191 = vector.broadcast %cst_116 : f32 to vector<16x16xf32>
    %192 = arith.select %190, %191, %176 : vector<16x16xi1>, vector<16x16xf32>
    %c7_117 = arith.constant 7 : index
    %c128_118 = arith.constant 128 : index
    %193 = vector.load %arg3[%c7_117, %c128_118] : memref<26x146xf32, #tpu.memory_space<vmem>>, vector<16x16xf32>
    %194 = arith.subf %102, %193 : vector<16x16xf32>
    %c9_119 = arith.constant 9 : index
    %c128_120 = arith.constant 128 : index
    %195 = vector.load %arg3[%c9_119, %c128_120] : memref<26x146xf32, #tpu.memory_space<vmem>>, vector<16x16xf32>
    %196 = arith.subf %102, %195 : vector<16x16xf32>
    %cst_121 = arith.constant 2.000000e+00 : f32
    %197 = vector.broadcast %cst_121 : f32 to vector<16x16xf32>
    %198 = arith.cmpf oeq, %159, %197 : vector<16x16xf32>
    %cst_122 = arith.constant 6.000000e+00 : f32
    %199 = vector.broadcast %cst_122 : f32 to vector<16x16xf32>
    %200 = arith.cmpf oeq, %159, %199 : vector<16x16xf32>
    %201 = arith.ori %198, %200 : vector<16x16xi1>
    %202 = arith.minimumf %194, %196 : vector<16x16xf32>
    %cst_123 = arith.constant 0.000000e+00 : f32
    %203 = vector.broadcast %cst_123 : f32 to vector<16x16xf32>
    %204 = arith.cmpf ogt, %202, %203 : vector<16x16xf32>
    %cst_124 = arith.constant dense<true> : vector<16x16xi1>
    %205 = arith.xori %204, %cst_124 : vector<16x16xi1>
    %206 = arith.andi %205, %201 : vector<16x16xi1>
    %cst_125 = arith.constant 0.000000e+00 : f32
    %207 = vector.broadcast %cst_125 : f32 to vector<16x16xf32>
    %208 = arith.select %206, %207, %192 : vector<16x16xi1>, vector<16x16xf32>
    %c7_126 = arith.constant 7 : index
    %c127_127 = arith.constant 127 : index
    %209 = vector.load %arg3[%c7_126, %c127_127] : memref<26x146xf32, #tpu.memory_space<vmem>>, vector<16x16xf32>
    %210 = arith.subf %102, %209 : vector<16x16xf32>
    %c9_128 = arith.constant 9 : index
    %c129_129 = arith.constant 129 : index
    %211 = vector.load %arg3[%c9_128, %c129_129] : memref<26x146xf32, #tpu.memory_space<vmem>>, vector<16x16xf32>
    %212 = arith.subf %102, %211 : vector<16x16xf32>
    %cst_130 = arith.constant 3.000000e+00 : f32
    %213 = vector.broadcast %cst_130 : f32 to vector<16x16xf32>
    %214 = arith.cmpf oeq, %159, %213 : vector<16x16xf32>
    %cst_131 = arith.constant 7.000000e+00 : f32
    %215 = vector.broadcast %cst_131 : f32 to vector<16x16xf32>
    %216 = arith.cmpf oeq, %159, %215 : vector<16x16xf32>
    %217 = arith.ori %214, %216 : vector<16x16xi1>
    %218 = arith.minimumf %210, %212 : vector<16x16xf32>
    %cst_132 = arith.constant 0.000000e+00 : f32
    %219 = vector.broadcast %cst_132 : f32 to vector<16x16xf32>
    %220 = arith.cmpf ogt, %218, %219 : vector<16x16xf32>
    %cst_133 = arith.constant dense<true> : vector<16x16xi1>
    %221 = arith.xori %220, %cst_133 : vector<16x16xi1>
    %222 = arith.andi %221, %217 : vector<16x16xi1>
    %cst_134 = arith.constant 0.000000e+00 : f32
    %223 = vector.broadcast %cst_134 : f32 to vector<16x16xf32>
    %224 = arith.select %222, %223, %208 : vector<16x16xi1>, vector<16x16xf32>
    %c0_135 = arith.constant 0 : index
    %c0_136 = arith.constant 0 : index
    %c0_137 = arith.constant 0 : index
    %c0_138 = arith.constant 0 : index
    %225 = vector.load %arg2[%c0_135, %c0_136, %c0_137, %c0_138] : memref<1x1x16x16xf32, #tpu.memory_space<vmem>>, vector<1x1x16x16xf32>
    %226 = vector.shape_cast %225 : vector<1x1x16x16xf32> to vector<16x16xf32>
    %227 = vector.shape_cast %224 : vector<16x16xf32> to vector<1x1x16x16xf32>
    tpu.vector_store %arg2[%c0_135, %c0_136, %c0_137, %c0_138], %227 {strides = array<i32>} : memref<1x1x16x16xf32, #tpu.memory_space<vmem>>, vector<1x1x16x16xf32>,
    return
  }
  func.func @transform_0(%arg0: i32) -> (i32, i32, i32, i32) {
    %c0_i32 = arith.constant 0 : i32
    %c0_i32_0 = arith.constant 0 : i32
    %c0_i32_1 = arith.constant 0 : i32
    %c0_i32_2 = arith.constant 0 : i32
    return %arg0, %c0_i32, %c0_i32_0, %c0_i32_1 : i32, i32, i32, i32
  }
  func.func @transform_1(%arg0: i32) -> (i32, i32, i32, i32) {
    %c0_i32 = arith.constant 0 : i32
    %c0_i32_0 = arith.constant 0 : i32
    %c0_i32_1 = arith.constant 0 : i32
    %c0_i32_2 = arith.constant 0 : i32
    return %arg0, %c0_i32, %c0_i32_0, %c0_i32_1 : i32, i32, i32, i32
  }
}

</mosaic_0001>

<llo_original>
// kernel: tpu_custom_call.1
$region0: #{tpu_custom_call.1}
  #allocation0 [shape = 'u32[]', space=smem, size = 0x4, offset = 0x4, fixed_abs, tag = 'smem constant byte address 0x4 - core index']
  #allocation1 [shape = 'u32[72,128]{1,0:T(1,128)}', space=vmem, size = 0x9000, scoped, tag = 'internal scratch']
  #allocation2 [shape = 'f32[26,146]{1,0:T(8,128)}', space=vmem, size = 0x8000, scoped, tag = 'scratch operand']
  %s0 = inlined_call_operand.hbm [shape: f32[2,4,16,16], index: 0, kind: input, shape index: {}]
  %s1 = inlined_call_operand.hbm [shape: f32[2,1,16,16], index: 1, kind: output, shape index: {}]
  %s2 = sld [smem:[#allocation0]]
  $region41: #{tpu_custom_call.1} parent=0
    _
  %s4 = ssub.s32 1, %s2
  %s5 = scalar_select 0, %s4, %s2
  $region1: #{tpu_custom_call.1} parent=0
    #allocation3 [shape = 'u8[65536]{0}', space=vmem, size = 0x10000, scoped, tag = 'input window, operand 0']
    #allocation4 [shape = 's32[2]{0}', space=sflag, size = 0x8, scoped, tag = 'scoped memory for tpu_custom_call.1']
    #allocation5 [shape = 's32[2]{0}', space=sflag, size = 0x8, scoped, tag = 'scoped memory for tpu_custom_call.1']
    #allocation6 [shape = 'u8[16384]{0}', space=vmem, size = 0x4000, scoped, tag = 'output window, operand 0']
    %6 = vsyncpa [#allocation4], 0
    %s7 = scalar_lea.sflag [#allocation4], 1
    %8 = vsyncpa %s7, 0
    %9 = vsyncpa [#allocation5], 0
    %s10 = scalar_lea.sflag [#allocation5], 1
    %11 = vsyncpa %s10, 0
    loop: start=0, step=1, limit=4
    $region2: #{tpu_custom_call.1} parent=1 // loop_pre_header
      _
    $region3: #{tpu_custom_call.1} parent=1 // loop_header
      %s13 = sphi 0, %s17
      %p14 = scmp.ge.s32.totalorder %s13, 4
      %s23 = sphi 0, %s25
      %s26 = sphi 0, %s23
      %s27 = sphi 0, %s26
      %s43 = sphi 0, %s27
      %s49 = sphi 0, %s51
      %s52 = sphi 0, %s49
      %s53 = sphi 0, %s52
      %s69 = sphi 0, %s53
    $region4: #{tpu_custom_call.1} parent=1 // loop_header_branch
      %16 = sbr.rel (%p14) target = $region8
    $region5: #{tpu_custom_call.1} parent=1 // loop_body
      %s18 = ssub.s32 %s13, 1
      %s19 = ssub.s32 %s13, 2
      %s20 = sadd.s32 %s13, 1
      %s21 = ssub.s32 %s13, %s20
      %p22 = scmp.eq.s32.totalorder %s21, 0
      %s24 = sadd.s32 %s23, 1
      %s25 = scalar_select %p22, %s23, %s24
      %p28 = pneg %p22
      %p29 = scmp.eq.s32.totalorder %s13, 1
      %p30 = por %p28, %p29
      %p31 = scmp.ne.s32.totalorder %s23, %s26
      %p32 = scmp.eq.s32.totalorder %s13, 0
      %p33 = por %p31, %p32
      %p34 = scmp.ne.s32.totalorder %s23, %s26
      %p35 = scmp.eq.s32.totalorder %s18, 1
      %p36 = por %p34, %p35
      %p37 = scmp.ne.s32.totalorder %s26, %s27
      %p38 = scmp.eq.s32.totalorder %s18, 0
      %p39 = por %p37, %p38
      %p40 = scmp.ne.s32.totalorder %s26, %s27
      %p41 = scmp.eq.s32.totalorder %s19, 1
      %p42 = por %p40, %p41
      %p44 = scmp.ne.s32.totalorder %s27, %s43
      %p45 = scmp.eq.s32.totalorder %s19, 0
      %p46 = por %p44, %p45
      %s47 = ssub.s32 %s13, %s20
      %p48 = scmp.eq.s32.totalorder %s47, 0
      %s50 = sadd.s32 %s49, 1
      %s51 = scalar_select %p48, %s49, %s50
      %p54 = pneg %p48
      %p55 = scmp.eq.s32.totalorder %s13, 1
      %p56 = por %p54, %p55
      %p57 = scmp.ne.s32.totalorder %s49, %s52
      %p58 = scmp.eq.s32.totalorder %s13, 0
      %p59 = por %p57, %p58
      %p60 = scmp.ne.s32.totalorder %s49, %s52
      %p61 = scmp.eq.s32.totalorder %s18, 1
      %p62 = por %p60, %p61
      %p63 = scmp.ne.s32.totalorder %s52, %s53
      %p64 = scmp.eq.s32.totalorder %s18, 0
      %p65 = por %p63, %p64
      %p66 = scmp.ne.s32.totalorder %s52, %s53
      %p67 = scmp.eq.s32.totalorder %s19, 1
      %p68 = por %p66, %p67
      %p70 = scmp.ne.s32.totalorder %s53, %s69
      %p71 = scmp.eq.s32.totalorder %s19, 0
      %p72 = por %p70, %p71
      %p73 = scmp.le.s32.totalorder 1, %s13
      %p74 = scmp.lt.s32.totalorder %s13, 3
      %p75 = pnand %p73, %p74
      %p76 = pneg %p75
      // Predicated region
      $region9: #{tpu_custom_call.1} parent=5 // pred_check
        _
      $region10: #{tpu_custom_call.1} parent=5 // pred_check_branch
        %78 = sbr.rel (%p75) target = $region12
      $region11: #{tpu_custom_call.1} parent=5 // pred_region
        %s79 = ssub.s32 %s13, 1
      $region12: #{tpu_custom_call.1} parent=5 // pred_fallthru
        _
      %p80 = scmp.lt.s32.totalorder %s13, 2
      // Predicated region
      $region13: #{tpu_custom_call.1} parent=5 // pred_check
        %p81 = pneg %p80
      $region14: #{tpu_custom_call.1} parent=5 // pred_check_branch
        %83 = sbr.rel (%p81) target = $region16
      $region15: #{tpu_custom_call.1} parent=5 // pred_region
        // Predicated region
        $region17: #{tpu_custom_call.1} parent=15 // pred_check
          %p84 = pneg %p33
        $region18: #{tpu_custom_call.1} parent=15 // pred_check_branch
          %86 = sbr.rel (%p84) target = $region20
        $region19: #{tpu_custom_call.1} parent=15 // pred_region
          %s87 = sand.u32 %s23, 1
          %s88 = scalar_lea.sflag [#allocation4], %s87
          %s89 = sand.u32 %s23, 1
          %s90 = smul.addr %s89, 64
          %s91 = scalar_lea.vmem [#allocation3], %s90
          %93 = vsyncadd %s88, 0
          %s94 = smul.addr %s13, 8
          %s95 = smul.addr %s94, 8
          %s96 = scalar_lea.hbm %s0, %s95
          %s97 = sshll.u32 %s96, 4
          %s98 = int_to_ptr.hbm [resolvable:$true] %s97
          %s99 = sshll.u32 %s91, 4
          %s100 = int_to_ptr.vmem [resolvable:$true] %s99
          %105 = dma.hbm_to_vmem [thread:$0]  %s98, 1024, %s100, %s88, 128, 128, 8
        $region20: #{tpu_custom_call.1} parent=15 // pred_fallthru
          _
      $region16: #{tpu_custom_call.1} parent=5 // pred_fallthru
        _
      %p106 = scmp.le.s32.totalorder 1, %s13
      %p107 = scmp.lt.s32.totalorder %s13, 3
      %p108 = pnand %p106, %p107
      %p109 = pneg %p108
      // Predicated region
      $region21: #{tpu_custom_call.1} parent=5 // pred_check
        _
      $region22: #{tpu_custom_call.1} parent=5 // pred_check_branch
        %111 = sbr.rel (%p108) target = $region24
      $region23: #{tpu_custom_call.1} parent=5 // pred_region
        %s112 = ssub.s32 %s13, 1
        %s113 = sand.u32 %s26, 1
        %s114 = scalar_lea.sflag [#allocation4], %s113
        %s115 = sand.u32 %s26, 1
        %s116 = smul.addr %s115, 64
        %s117 = scalar_lea.vmem [#allocation3], %s116
        // Predicated region
        $region25: #{tpu_custom_call.1} parent=23 // pred_check
          %p118 = pneg %p39
        $region26: #{tpu_custom_call.1} parent=23 // pred_check_branch
          %120 = sbr.rel (%p118) target = $region28
        $region27: #{tpu_custom_call.1} parent=23 // pred_region
          %122 = dma.done %s114, 1024
        $region28: #{tpu_custom_call.1} parent=23 // pred_fallthru
          _
        %s123 = sand.u32 %s26, 1
        %s124 = scalar_lea.sflag [#allocation4], %s123
        %s125 = sand.u32 %s26, 1
        %s126 = smul.addr %s125, 64
        %s127 = scalar_lea.vmem [#allocation3], %s126
        %p128 = pneg %p39
        %p129 = pneg %p36
        %p130 = pneg %p65
        %p131 = pneg %p62
        %s132 = sand.u32 %s52, 1
        %s133 = scalar_lea.sflag [#allocation5], %s132
        %s134 = sand.u32 %s52, 1
        %s135 = smul.addr %s134, 16
        %s136 = scalar_lea.vmem [#allocation6], %s135
        %137 = vst [vmem:[#allocation2] sm:$0xff] 0.0
        %vm138 = vcmask 146432
        %139 = vst.msk [vmem:[#allocation2 + $0x8] sm:$0xff] %vm138, 0.0
        %140 = vst [vmem:[#allocation2 + $0x10] sm:$0xff] 0.0
        %141 = vst.msk [vmem:[#allocation2 + $0x18] sm:$0xff] %vm138, 0.0
        %142 = vst [vmem:[#allocation2 + $0x20] sm:$0xff] 0.0
        %143 = vst.msk [vmem:[#allocation2 + $0x28] sm:$0xff] %vm138, 0.0
        %144 = vst [vmem:[#allocation2 + $0x30] sm:$0x3] 0.0
        %vm145 = vcmask 140288
        %146 = vst.msk [vmem:[#allocation2 + $0x38] sm:$0x3] %vm145, 0.0
        %v147 = vld [vmem:[%s117] sm:$0xff]
        %v148 = vld [vmem:[%s117 + $0x8] sm:$0xff]
        %s149 = scalar_lea.vmem %s117, 16 [#allocation3]
        %v150 = vld [vmem:[%s149] sm:$0xff]
        %v151 = vld [vmem:[%s149 + $0x8] sm:$0xff]
        %v152 = vadd.f32 %v147, %v150
        %v153 = vadd.f32 %v148, %v151
        %s154 = scalar_lea.vmem %s117, 32 [#allocation3]
        %v155 = vld [vmem:[%s154] sm:$0xff]
        %v156 = vld [vmem:[%s154 + $0x8] sm:$0xff]
        %v157 = vadd.f32 %v152, %v155
        %v158 = vadd.f32 %v153, %v156
        %s159 = scalar_lea.vmem %s117, 48 [#allocation3]
        %v160 = vld [vmem:[%s159] sm:$0xff]
        %v161 = vld [vmem:[%s159 + $0x8] sm:$0xff]
        %v162 = vadd.f32 %v157, %v160
        %v163 = vadd.f32 %v158, %v161
        %vm164 = vcmask 130048
        %165 = vst.msk [vmem:[#allocation2 + $0x18] sm:$0xff] %vm164, %v162
        %166 = vst.msk [vmem:[#allocation2 + $0x28] sm:$0xff] %vm164, %v163
        %v167 = vmul.f32 %v162, 0.20417996
        %v168 = vmul.f32 %v163, 0.20417996
        %v169 = vld [vmem:[#allocation2] sm:$0x80]
        %v170 = vld [vmem:[#allocation2 + $0x8] sm:$0x80]
        %v171 = vld [vmem:[#allocation2 + $0x10] sm:$0xff]
        %v172 = vld [vmem:[#allocation2 + $0x18] sm:$0xff]
        %v173 = vld [vmem:[#allocation2 + $0x20] sm:$0x7f]
        %v174 = vld [vmem:[#allocation2 + $0x28] sm:$0x7f]
        %v175 = vmul.f32 %v169, 0.07511361
        %v176 = vmul.f32 %v170, 0.07511361
        %v177 = vmul.f32 %v171, 0.07511361
        %v178 = vmul.f32 %v172, 0.07511361
        %v179 = vmul.f32 %v173, 0.07511361
        %v180 = vmul.f32 %v174, 0.07511361
        %vm187 = vcmask 1040384
        %v188 = vrot.slane %v175, 7
        %v189 = vrot.slane %v177, 7
        %v190 = vsel %vm187, %v188, %v189
        %v191 = vrot.slane %v176, 7
        %v192 = vrot.slane %v178, 7
        %v193 = vsel %vm187, %v191, %v192
        %v194 = vrot.slane %v179, 7
        %v195 = vsel %vm187, %v189, %v194
        %v196 = vrot.slane %v180, 7
        %v197 = vsel %vm187, %v192, %v196
        %198 = vrot.lane.b32.xlu0 %v190, 1
        %v199 = vpop.permute.xlu0 %198
        %200 = vrot.lane.b32.xlu0 %v193, 1
        %v201 = vpop.permute.xlu0 %200
        %202 = vrot.lane.b32.xlu0 %v195, 1
        %v203 = vpop.permute.xlu0 %202
        %204 = vrot.lane.b32.xlu0 %v197, 1
        %v205 = vpop.permute.xlu0 %204
        %vm206 = vcmask 7168
        %v207 = vsel %vm206, %v199, %v201
        %v208 = vsel %vm206, %v203, %v205
        %v211 = vadd.f32 %v167, %v207
        %v212 = vadd.f32 %v168, %v208
        %v213 = vmul.f32 %v170, 0.123841405
        %v214 = vmul.f32 %v172, 0.123841405
        %v215 = vmul.f32 %v174, 0.123841405
        %v219 = vrot.slane %v213, 7
        %v220 = vrot.slane %v214, 7
        %v221 = vsel %vm187, %v219, %v220
        %v222 = vrot.slane %v215, 7
        %v223 = vsel %vm187, %v220, %v222
        %v226 = vadd.f32 %v211, %v221
        %v227 = vadd.f32 %v212, %v223
        %228 = vrot.lane.b32.xlu0 %v193, 127
        %v229 = vpop.permute.xlu0 %228
        %230 = vrot.lane.b32.xlu0 %v197, 127
        %v231 = vpop.permute.xlu0 %230
        %v234 = vadd.f32 %v226, %v229
        %v235 = vadd.f32 %v227, %v231
        %v236 = vld [vmem:[#allocation2 + $0x20] sm:$0xff]
        %v237 = vld [vmem:[#allocation2 + $0x28] sm:$0xff]
        %v238 = vmul.f32 %v171, 0.123841405
        %v239 = vmul.f32 %v236, 0.123841405
        %v240 = vmul.f32 %v237, 0.123841405
        %244 = vrot.lane.b32.xlu0 %v238, 1
        %v245 = vpop.permute.xlu0 %244
        %246 = vrot.lane.b32.xlu0 %v214, 1
        %v247 = vpop.permute.xlu0 %246
        %248 = vrot.lane.b32.xlu0 %v239, 1
        %v249 = vpop.permute.xlu0 %248
        %250 = vrot.lane.b32.xlu0 %v240, 1
        %v251 = vpop.permute.xlu0 %250
        %v252 = vsel %vm206, %v245, %v247
        %v253 = vsel %vm206, %v249, %v251
        %v256 = vadd.f32 %v234, %v252
        %v257 = vadd.f32 %v235, %v253
        %258 = vrot.lane.b32.xlu0 %v214, 127
        %v259 = vpop.permute.xlu0 %258
        %260 = vrot.lane.b32.xlu0 %v240, 127
        %v261 = vpop.permute.xlu0 %260
        %v264 = vadd.f32 %v256, %v259
        %v265 = vadd.f32 %v257, %v261
        %v266 = vld [vmem:[#allocation2 + $0x10] sm:$0xfe]
        %v267 = vld [vmem:[#allocation2 + $0x18] sm:$0xfe]
        %v268 = vld [vmem:[#allocation2 + $0x30] sm:$0x1]
        %v269 = vld [vmem:[#allocation2 + $0x38] sm:$0x1]
        %v270 = vmul.f32 %v266, 0.07511361
        %v271 = vmul.f32 %v267, 0.07511361
        %v272 = vmul.f32 %v236, 0.07511361
        %v273 = vmul.f32 %v237, 0.07511361
        %v274 = vmul.f32 %v268, 0.07511361
        %v275 = vmul.f32 %v269, 0.07511361
        %vm282 = vcmask 1046528
        %v283 = vrot.slane %v270, 1
        %v284 = vrot.slane %v272, 1
        %v285 = vsel %vm282, %v283, %v284
        %v286 = vrot.slane %v271, 1
        %v287 = vrot.slane %v273, 1
        %v288 = vsel %vm282, %v286, %v287
        %v289 = vrot.slane %v274, 1
        %v290 = vsel %vm282, %v284, %v289
        %v291 = vrot.slane %v275, 1
        %v292 = vsel %vm282, %v287, %v291
        %293 = vrot.lane.b32.xlu0 %v285, 1
        %v294 = vpop.permute.xlu0 %293
        %295 = vrot.lane.b32.xlu0 %v288, 1
        %v296 = vpop.permute.xlu0 %295
        %297 = vrot.lane.b32.xlu0 %v290, 1
        %v298 = vpop.permute.xlu0 %297
        %299 = vrot.lane.b32.xlu0 %v292, 1
        %v300 = vpop.permute.xlu0 %299
        %v301 = vsel %vm206, %v294, %v296
        %v302 = vsel %vm206, %v298, %v300
        %v305 = vadd.f32 %v264, %v301
        %v306 = vadd.f32 %v265, %v302
        %v307 = vmul.f32 %v267, 0.123841405
        %v308 = vmul.f32 %v269, 0.123841405
        %v311 = vrot.slane %v307, 1
        %v312 = vrot.slane %v240, 1
        %v313 = vsel %vm282, %v311, %v312
        %v314 = vrot.slane %v308, 1
        %v315 = vsel %vm282, %v312, %v314
        %v318 = vadd.f32 %v305, %v313
        %v319 = vadd.f32 %v306, %v315
        %320 = vrot.lane.b32.xlu0 %v288, 127
        %v321 = vpop.permute.xlu0 %320
        %322 = vrot.lane.b32.xlu0 %v292, 127
        %v323 = vpop.permute.xlu0 %322
        %v326 = vadd.f32 %v318, %v321
        %v327 = vadd.f32 %v319, %v323
        %328 = vst.msk [vmem:[#allocation2 + $0x18] sm:$0xff] %vm164, %v326
        %329 = vst.msk [vmem:[#allocation2 + $0x28] sm:$0xff] %vm164, %v327
        %v330 = vld [vmem:[#allocation2] sm:$0x80]
        %v331 = vld [vmem:[#allocation2 + $0x8] sm:$0x80]
        %v332 = vld [vmem:[#allocation2 + $0x10] sm:$0xff]
        %v333 = vld [vmem:[#allocation2 + $0x18] sm:$0xff]
        %v334 = vld [vmem:[#allocation2 + $0x20] sm:$0x7f]
        %v335 = vld [vmem:[#allocation2 + $0x28] sm:$0x7f]
        %v336 = vmul.f32 %v330, -0.5
        %v337 = vmul.f32 %v331, -0.5
        %v338 = vmul.f32 %v332, -0.5
        %v339 = vmul.f32 %v333, -0.5
        %v340 = vmul.f32 %v334, -0.5
        %v341 = vmul.f32 %v335, -0.5
        %v342 = vadd.f32 %v336, 0.0
        %v343 = vadd.f32 %v337, 0.0
        %v344 = vadd.f32 %v338, 0.0
        %v345 = vadd.f32 %v339, 0.0
        %v346 = vadd.f32 %v340, 0.0
        %v347 = vadd.f32 %v341, 0.0
        %v348 = vmul.f32 %v331, -1.0
        %v349 = vmul.f32 %v333, -1.0
        %v350 = vmul.f32 %v335, -1.0
        %354 = vrot.lane.b32.xlu0 %v348, 127
        %v355 = vpop.permute.xlu0 %354
        %356 = vrot.lane.b32.xlu0 %v349, 127
        %v357 = vpop.permute.xlu0 %356
        %358 = vrot.lane.b32.xlu0 %v350, 127
        %v359 = vpop.permute.xlu0 %358
        %v363 = vadd.f32 %v342, %v355
        %v364 = vadd.f32 %v343, %v355
        %v365 = vadd.f32 %v344, %v357
        %v366 = vadd.f32 %v345, %v357
        %v367 = vadd.f32 %v346, %v359
        %v368 = vadd.f32 %v347, %v359
        %v369 = vmul.f32 %v331, 0.5
        %v370 = vmul.f32 %v333, 0.5
        %v371 = vmul.f32 %v335, 0.5
        %375 = vrot.lane.b32.xlu0 %v369, 126
        %v376 = vpop.permute.xlu0 %375
        %377 = vrot.lane.b32.xlu0 %v370, 126
        %v378 = vpop.permute.xlu0 %377
        %379 = vrot.lane.b32.xlu0 %v371, 126
        %v380 = vpop.permute.xlu0 %379
        %v384 = vadd.f32 %v342, %v376
        %v385 = vadd.f32 %v343, %v376
        %v386 = vadd.f32 %v344, %v378
        %v387 = vadd.f32 %v345, %v378
        %v388 = vadd.f32 %v346, %v380
        %v389 = vadd.f32 %v347, %v380
        %393 = vrot.lane.b32.xlu0 %v337, 126
        %v394 = vpop.permute.xlu0 %393
        %395 = vrot.lane.b32.xlu0 %v339, 126
        %v396 = vpop.permute.xlu0 %395
        %397 = vrot.lane.b32.xlu0 %v341, 126
        %v398 = vpop.permute.xlu0 %397
        %v402 = vadd.f32 %v363, %v394
        %v403 = vadd.f32 %v364, %v394
        %v404 = vadd.f32 %v365, %v396
        %v405 = vadd.f32 %v366, %v396
        %v406 = vadd.f32 %v367, %v398
        %v407 = vadd.f32 %v368, %v398
        %v408 = vld [vmem:[#allocation2 + $0x20] sm:$0xff]
        %v409 = vld [vmem:[#allocation2 + $0x28] sm:$0xff]
        %v410 = vmul.f32 %v332, -1.0
        %v411 = vmul.f32 %v408, -1.0
        %v412 = vmul.f32 %v409, -1.0
        %v416 = vrot.slane %v410, 1
        %v417 = vrot.slane %v349, 1
        %v418 = vrot.slane %v411, 1
        %v419 = vsel %vm282, %v416, %v418
        %v420 = vrot.slane %v412, 1
        %v421 = vsel %vm282, %v417, %v420
        %v428 = vadd.f32 %v384, %v416
        %v429 = vadd.f32 %v385, %v417
        %v430 = vadd.f32 %v386, %v419
        %v431 = vadd.f32 %v387, %v421
        %v432 = vadd.f32 %v388, %v418
        %v433 = vadd.f32 %v389, %v420
        %v436 = vrot.slane %v333, 1
        %v437 = vrot.slane %v409, 1
        %v438 = vsel %vm282, %v436, %v437
        %439 = vrot.lane.b32.xlu0 %v436, 126
        %v440 = vpop.permute.xlu0 %439
        %441 = vrot.lane.b32.xlu0 %v438, 126
        %v442 = vpop.permute.xlu0 %441
        %443 = vrot.lane.b32.xlu0 %v437, 126
        %v444 = vpop.permute.xlu0 %443
        %v448 = vadd.f32 %v428, %v440
        %v449 = vadd.f32 %v429, %v440
        %v450 = vadd.f32 %v430, %v442
        %v451 = vadd.f32 %v431, %v442
        %v452 = vadd.f32 %v432, %v444
        %v453 = vadd.f32 %v433, %v444
        %v454 = vld [vmem:[#allocation2 + $0x10] sm:$0xfe]
        %v455 = vld [vmem:[#allocation2 + $0x18] sm:$0xfe]
        %v456 = vld [vmem:[#allocation2 + $0x30] sm:$0x1]
        %v457 = vld [vmem:[#allocation2 + $0x38] sm:$0x1]
        %v458 = vmul.f32 %v454, -0.5
        %v459 = vmul.f32 %v455, -0.5
        %v460 = vmul.f32 %v408, -0.5
        %v461 = vmul.f32 %v409, -0.5
        %v462 = vmul.f32 %v456, -0.5
        %v463 = vmul.f32 %v457, -0.5
        %vm470 = vcmask 1045504
        %v471 = vrot.slane %v458, 2
        %v472 = vrot.slane %v459, 2
        %v473 = vrot.slane %v460, 2
        %v474 = vsel %vm470, %v471, %v473
        %v475 = vrot.slane %v461, 2
        %v476 = vsel %vm470, %v472, %v475
        %v477 = vrot.slane %v462, 2
        %v478 = vsel %vm470, %v473, %v477
        %v479 = vrot.slane %v463, 2
        %v480 = vsel %vm470, %v475, %v479
        %v487 = vadd.f32 %v448, %v471
        %v488 = vadd.f32 %v449, %v472
        %v489 = vadd.f32 %v450, %v474
        %v490 = vadd.f32 %v451, %v476
        %v491 = vadd.f32 %v452, %v478
        %v492 = vadd.f32 %v453, %v480
        %v493 = vmul.f32 %v454, 0.5
        %v494 = vmul.f32 %v455, 0.5
        %v495 = vmul.f32 %v408, 0.5
        %v496 = vmul.f32 %v409, 0.5
        %v497 = vmul.f32 %v456, 0.5
        %v498 = vmul.f32 %v457, 0.5
        %v505 = vrot.slane %v493, 2
        %v506 = vrot.slane %v494, 2
        %v507 = vrot.slane %v495, 2
        %v508 = vsel %vm470, %v505, %v507
        %v509 = vrot.slane %v496, 2
        %v510 = vsel %vm470, %v506, %v509
        %v511 = vrot.slane %v497, 2
        %v512 = vsel %vm470, %v507, %v511
        %v513 = vrot.slane %v498, 2
        %v514 = vsel %vm470, %v509, %v513
        %v521 = vadd.f32 %v402, %v505
        %v522 = vadd.f32 %v403, %v506
        %v523 = vadd.f32 %v404, %v508
        %v524 = vadd.f32 %v405, %v510
        %v525 = vadd.f32 %v406, %v512
        %v526 = vadd.f32 %v407, %v514
        %v529 = vrot.slane %v455, 2
        %v530 = vrot.slane %v409, 2
        %v531 = vsel %vm470, %v529, %v530
        %v532 = vrot.slane %v457, 2
        %v533 = vsel %vm470, %v530, %v532
        %534 = vrot.lane.b32.xlu0 %v529, 127
        %v535 = vpop.permute.xlu0 %534
        %536 = vrot.lane.b32.xlu0 %v531, 127
        %v537 = vpop.permute.xlu0 %536
        %538 = vrot.lane.b32.xlu0 %v533, 127
        %v539 = vpop.permute.xlu0 %538
        %v543 = vadd.f32 %v521, %v535
        %v544 = vadd.f32 %v522, %v535
        %v545 = vadd.f32 %v523, %v537
        %v546 = vadd.f32 %v524, %v537
        %v547 = vadd.f32 %v525, %v539
        %v548 = vadd.f32 %v526, %v539
        %549 = vrot.lane.b32.xlu0 %v506, 126
        %v550 = vpop.permute.xlu0 %549
        %551 = vrot.lane.b32.xlu0 %v510, 126
        %v552 = vpop.permute.xlu0 %551
        %553 = vrot.lane.b32.xlu0 %v514, 126
        %v554 = vpop.permute.xlu0 %553
        %v558 = vadd.f32 %v487, %v550
        %v559 = vadd.f32 %v488, %v550
        %v560 = vadd.f32 %v489, %v552
        %v561 = vadd.f32 %v490, %v552
        %v562 = vadd.f32 %v491, %v554
        %v563 = vadd.f32 %v492, %v554
        %v564 = vadd.f32 %v543, %v550
        %v565 = vadd.f32 %v544, %v550
        %v566 = vadd.f32 %v545, %v552
        %v567 = vadd.f32 %v546, %v552
        %v568 = vadd.f32 %v547, %v554
        %v569 = vadd.f32 %v548, %v554
        %v570 = vmul.f32 %v558, 0.25
        %v571 = vmul.f32 %v559, 0.25
        %v572 = vmul.f32 %v560, 0.25
        %v573 = vmul.f32 %v561, 0.25
        %v574 = vmul.f32 %v562, 0.25
        %v575 = vmul.f32 %v563, 0.25
        %v576 = vmul.f32 %v564, 0.25
        %v577 = vmul.f32 %v565, 0.25
        %v578 = vmul.f32 %v566, 0.25
        %v579 = vmul.f32 %v567, 0.25
        %v580 = vmul.f32 %v568, 0.25
        %v581 = vmul.f32 %v569, 0.25
        %v582 = vmul.f32 %v570, %v570
        %v583 = vmul.f32 %v571, %v571
        %v584 = vmul.f32 %v572, %v572
        %v585 = vmul.f32 %v573, %v573
        %v586 = vmul.f32 %v574, %v574
        %v587 = vmul.f32 %v575, %v575
        %v588 = vmul.f32 %v576, %v576
        %v589 = vmul.f32 %v577, %v577
        %v590 = vmul.f32 %v578, %v578
        %v591 = vmul.f32 %v579, %v579
        %v592 = vmul.f32 %v580, %v580
        %v593 = vmul.f32 %v581, %v581
        %v594 = vadd.f32 %v582, %v588
        %v595 = vadd.f32 %v583, %v589
        %v596 = vadd.f32 %v584, %v590
        %v597 = vadd.f32 %v585, %v591
        %v598 = vadd.f32 %v586, %v592
        %v599 = vadd.f32 %v587, %v593
        %v600 = vrsqrt.pop %v594
        %v601 = vmul.f32 %v600, %v594
        %v602 = vmul.f32 %v601, %v600
        %v603 = vmul.f32 0.5, %v602
        %v604 = vsub.f32 1.5, %v603
        %v605 = vmul.f32 %v600, %v604
        %v606 = vmul.f32 %v594, %v605
        %vm607 = vcmp.eq.f32.partialorder %v594, inf
        %v608 = vsel %vm607, %v594, %v606
        %vm609 = vcmp.eq.f32.partialorder %v594, 0.0
        %v610 = vand.u32 %v594, 2147483648
        %v611 = vsel %vm609, %v610, %v608
        %v612 = vrsqrt.pop %v595
        %v613 = vmul.f32 %v612, %v595
        %v614 = vmul.f32 %v613, %v612
        %v615 = vmul.f32 0.5, %v614
        %v616 = vsub.f32 1.5, %v615
        %v617 = vmul.f32 %v612, %v616
        %v618 = vmul.f32 %v595, %v617
        %vm619 = vcmp.eq.f32.partialorder %v595, inf
        %v620 = vsel %vm619, %v595, %v618
        %vm621 = vcmp.eq.f32.partialorder %v595, 0.0
        %v622 = vand.u32 %v595, 2147483648
        %v623 = vsel %vm621, %v622, %v620
        %v624 = vrsqrt.pop %v596
        %v625 = vmul.f32 %v624, %v596
        %v626 = vmul.f32 %v625, %v624
        %v627 = vmul.f32 0.5, %v626
        %v628 = vsub.f32 1.5, %v627
        %v629 = vmul.f32 %v624, %v628
        %v630 = vmul.f32 %v596, %v629
        %vm631 = vcmp.eq.f32.partialorder %v596, inf
        %v632 = vsel %vm631, %v596, %v630
        %vm633 = vcmp.eq.f32.partialorder %v596, 0.0
        %v634 = vand.u32 %v596, 2147483648
        %v635 = vsel %vm633, %v634, %v632
        %v636 = vrsqrt.pop %v597
        %v637 = vmul.f32 %v636, %v597
        %v638 = vmul.f32 %v637, %v636
        %v639 = vmul.f32 0.5, %v638
        %v640 = vsub.f32 1.5, %v639
        %v641 = vmul.f32 %v636, %v640
        %v642 = vmul.f32 %v597, %v641
        %vm643 = vcmp.eq.f32.partialorder %v597, inf
        %v644 = vsel %vm643, %v597, %v642
        %vm645 = vcmp.eq.f32.partialorder %v597, 0.0
        %v646 = vand.u32 %v597, 2147483648
        %v647 = vsel %vm645, %v646, %v644
        %v648 = vrsqrt.pop %v598
        %v649 = vmul.f32 %v648, %v598
        %v650 = vmul.f32 %v649, %v648
        %v651 = vmul.f32 0.5, %v650
        %v652 = vsub.f32 1.5, %v651
        %v653 = vmul.f32 %v648, %v652
        %v654 = vmul.f32 %v598, %v653
        %vm655 = vcmp.eq.f32.partialorder %v598, inf
        %v656 = vsel %vm655, %v598, %v654
        %vm657 = vcmp.eq.f32.partialorder %v598, 0.0
        %v658 = vand.u32 %v598, 2147483648
        %v659 = vsel %vm657, %v658, %v656
        %v660 = vrsqrt.pop %v599
        %v661 = vmul.f32 %v660, %v599
        %v662 = vmul.f32 %v661, %v660
        %v663 = vmul.f32 0.5, %v662
        %v664 = vsub.f32 1.5, %v663
        %v665 = vmul.f32 %v660, %v664
        %v666 = vmul.f32 %v599, %v665
        %vm667 = vcmp.eq.f32.partialorder %v599, inf
        %v668 = vsel %vm667, %v599, %v666
        %vm669 = vcmp.eq.f32.partialorder %v599, 0.0
        %v670 = vand.u32 %v599, 2147483648
        %v671 = vsel %vm669, %v670, %v668
        %v672 = vrcp.pop %v570
        %v673 = vmul.f32 %v570, %v672
        %v674 = vsub.f32 1.0, %v673
        %v675 = vmul.f32 %v672, %v674
        %v676 = vadd.f32 %v672, %v675
        %vm677 = vweird.f32 %v570
        %vm678 = vweird.f32 %v672
        %vm679 = vmor %vm677, %vm678
        %v680 = vsel %vm679, %v672, %v676
        %v681 = vand.u32 2147483647, %v570
        %vm682 = vcmp.eq.f32.partialorder %v681, 8.507059e+37
        %v683 = vand.u32 %v570, 2147483648
        %v684 = vor.u32 1.1754944e-38, %v683
        %v685 = vsel %vm682, %v684, %v680
        %v686 = vmul.f32 %v576, %v685
        %v687 = vrcp.pop %v571
        %v688 = vmul.f32 %v571, %v687
        %v689 = vsub.f32 1.0, %v688
        %v690 = vmul.f32 %v687, %v689
        %v691 = vadd.f32 %v687, %v690
        %vm692 = vweird.f32 %v571
        %vm693 = vweird.f32 %v687
        %vm694 = vmor %vm692, %vm693
        %v695 = vsel %vm694, %v687, %v691
        %v696 = vand.u32 2147483647, %v571
        %vm697 = vcmp.eq.f32.partialorder %v696, 8.507059e+37
        %v698 = vand.u32 %v571, 2147483648
        %v699 = vor.u32 1.1754944e-38, %v698
        %v700 = vsel %vm697, %v699, %v695
        %v701 = vmul.f32 %v577, %v700
        %v702 = vrcp.pop %v572
        %v703 = vmul.f32 %v572, %v702
        %v704 = vsub.f32 1.0, %v703
        %v705 = vmul.f32 %v702, %v704
        %v706 = vadd.f32 %v702, %v705
        %vm707 = vweird.f32 %v572
        %vm708 = vweird.f32 %v702
        %vm709 = vmor %vm707, %vm708
        %v710 = vsel %vm709, %v702, %v706
        %v711 = vand.u32 2147483647, %v572
        %vm712 = vcmp.eq.f32.partialorder %v711, 8.507059e+37
        %v713 = vand.u32 %v572, 2147483648
        %v714 = vor.u32 1.1754944e-38, %v713
        %v715 = vsel %vm712, %v714, %v710
        %v716 = vmul.f32 %v578, %v715
        %v717 = vrcp.pop %v573
        %v718 = vmul.f32 %v573, %v717
        %v719 = vsub.f32 1.0, %v718
        %v720 = vmul.f32 %v717, %v719
        %v721 = vadd.f32 %v717, %v720
        %vm722 = vweird.f32 %v573
        %vm723 = vweird.f32 %v717
        %vm724 = vmor %vm722, %vm723
        %v725 = vsel %vm724, %v717, %v721
        %v726 = vand.u32 2147483647, %v573
        %vm727 = vcmp.eq.f32.partialorder %v726, 8.507059e+37
        %v728 = vand.u32 %v573, 2147483648
        %v729 = vor.u32 1.1754944e-38, %v728
        %v730 = vsel %vm727, %v729, %v725
        %v731 = vmul.f32 %v579, %v730
        %v732 = vrcp.pop %v574
        %v733 = vmul.f32 %v574, %v732
        %v734 = vsub.f32 1.0, %v733
        %v735 = vmul.f32 %v732, %v734
        %v736 = vadd.f32 %v732, %v735
        %vm737 = vweird.f32 %v574
        %vm738 = vweird.f32 %v732
        %vm739 = vmor %vm737, %vm738
        %v740 = vsel %vm739, %v732, %v736
        %v741 = vand.u32 2147483647, %v574
        %vm742 = vcmp.eq.f32.partialorder %v741, 8.507059e+37
        %v743 = vand.u32 %v574, 2147483648
        %v744 = vor.u32 1.1754944e-38, %v743
        %v745 = vsel %vm742, %v744, %v740
        %v746 = vmul.f32 %v580, %v745
        %v747 = vrcp.pop %v575
        %v748 = vmul.f32 %v575, %v747
        %v749 = vsub.f32 1.0, %v748
        %v750 = vmul.f32 %v747, %v749
        %v751 = vadd.f32 %v747, %v750
        %vm752 = vweird.f32 %v575
        %vm753 = vweird.f32 %v747
        %vm754 = vmor %vm752, %vm753
        %v755 = vsel %vm754, %v747, %v751
        %v756 = vand.u32 2147483647, %v575
        %vm757 = vcmp.eq.f32.partialorder %v756, 8.507059e+37
        %v758 = vand.u32 %v575, 2147483648
        %v759 = vor.u32 1.1754944e-38, %v758
        %v760 = vsel %vm757, %v759, %v755
        %v761 = vmul.f32 %v581, %v760
        %vm762 = vcmp.gt.f32.partialorder %v686, -5.0273395
        %vm763 = vcmp.gt.f32.partialorder %v701, -5.0273395
        %vm764 = vcmp.gt.f32.partialorder %v716, -5.0273395
        %vm765 = vcmp.gt.f32.partialorder %v731, -5.0273395
        %vm766 = vcmp.gt.f32.partialorder %v746, -5.0273395
        %vm767 = vcmp.gt.f32.partialorder %v761, -5.0273395
        %v768 = vsel %vm762, 1.0, 0.0
        %v769 = vsel %vm763, 1.0, 0.0
        %v770 = vsel %vm764, 1.0, 0.0
        %v771 = vsel %vm765, 1.0, 0.0
        %v772 = vsel %vm766, 1.0, 0.0
        %v773 = vsel %vm767, 1.0, 0.0
        %v774 = vadd.f32 %v768, 0.0
        %v775 = vadd.f32 %v769, 0.0
        %v776 = vadd.f32 %v770, 0.0
        %v777 = vadd.f32 %v771, 0.0
        %v778 = vadd.f32 %v772, 0.0
        %v779 = vadd.f32 %v773, 0.0
        %vm780 = vcmp.gt.f32.partialorder %v686, -1.4966058
        %vm781 = vcmp.gt.f32.partialorder %v701, -1.4966058
        %vm782 = vcmp.gt.f32.partialorder %v716, -1.4966058
        %vm783 = vcmp.gt.f32.partialorder %v731, -1.4966058
        %vm784 = vcmp.gt.f32.partialorder %v746, -1.4966058
        %vm785 = vcmp.gt.f32.partialorder %v761, -1.4966058
        %v786 = vsel %vm780, 1.0, 0.0
        %v787 = vsel %vm781, 1.0, 0.0
        %v788 = vsel %vm782, 1.0, 0.0
        %v789 = vsel %vm783, 1.0, 0.0
        %v790 = vsel %vm784, 1.0, 0.0
        %v791 = vsel %vm785, 1.0, 0.0
        %v792 = vadd.f32 %v774, %v786
        %v793 = vadd.f32 %v775, %v787
        %v794 = vadd.f32 %v776, %v788
        %v795 = vadd.f32 %v777, %v789
        %v796 = vadd.f32 %v778, %v790
        %v797 = vadd.f32 %v779, %v791
        %vm798 = vcmp.gt.f32.partialorder %v686, -0.6681786
        %vm799 = vcmp.gt.f32.partialorder %v701, -0.6681786
        %vm800 = vcmp.gt.f32.partialorder %v716, -0.6681786
        %vm801 = vcmp.gt.f32.partialorder %v731, -0.6681786
        %vm802 = vcmp.gt.f32.partialorder %v746, -0.6681786
        %vm803 = vcmp.gt.f32.partialorder %v761, -0.6681786
        %v804 = vsel %vm798, 1.0, 0.0
        %v805 = vsel %vm799, 1.0, 0.0
        %v806 = vsel %vm800, 1.0, 0.0
        %v807 = vsel %vm801, 1.0, 0.0
        %v808 = vsel %vm802, 1.0, 0.0
        %v809 = vsel %vm803, 1.0, 0.0
        %v810 = vadd.f32 %v792, %v804
        %v811 = vadd.f32 %v793, %v805
        %v812 = vadd.f32 %v794, %v806
        %v813 = vadd.f32 %v795, %v807
        %v814 = vadd.f32 %v796, %v808
        %v815 = vadd.f32 %v797, %v809
        %vm816 = vcmp.gt.f32.partialorder %v686, -0.19891237
        %vm817 = vcmp.gt.f32.partialorder %v701, -0.19891237
        %vm818 = vcmp.gt.f32.partialorder %v716, -0.19891237
        %vm819 = vcmp.gt.f32.partialorder %v731, -0.19891237
        %vm820 = vcmp.gt.f32.partialorder %v746, -0.19891237
        %vm821 = vcmp.gt.f32.partialorder %v761, -0.19891237
        %v822 = vsel %vm816, 1.0, 0.0
        %v823 = vsel %vm817, 1.0, 0.0
        %v824 = vsel %vm818, 1.0, 0.0
        %v825 = vsel %vm819, 1.0, 0.0
        %v826 = vsel %vm820, 1.0, 0.0
        %v827 = vsel %vm821, 1.0, 0.0
        %v828 = vadd.f32 %v810, %v822
        %v829 = vadd.f32 %v811, %v823
        %v830 = vadd.f32 %v812, %v824
        %v831 = vadd.f32 %v813, %v825
        %v832 = vadd.f32 %v814, %v826
        %v833 = vadd.f32 %v815, %v827
        %vm834 = vcmp.gt.f32.partialorder %v686, 0.19891237
        %vm835 = vcmp.gt.f32.partialorder %v701, 0.19891237
        %vm836 = vcmp.gt.f32.partialorder %v716, 0.19891237
        %vm837 = vcmp.gt.f32.partialorder %v731, 0.19891237
        %vm838 = vcmp.gt.f32.partialorder %v746, 0.19891237
        %vm839 = vcmp.gt.f32.partialorder %v761, 0.19891237
        %v840 = vsel %vm834, 1.0, 0.0
        %v841 = vsel %vm835, 1.0, 0.0
        %v842 = vsel %vm836, 1.0, 0.0
        %v843 = vsel %vm837, 1.0, 0.0
        %v844 = vsel %vm838, 1.0, 0.0
        %v845 = vsel %vm839, 1.0, 0.0
        %v846 = vadd.f32 %v828, %v840
        %v847 = vadd.f32 %v829, %v841
        %v848 = vadd.f32 %v830, %v842
        %v849 = vadd.f32 %v831, %v843
        %v850 = vadd.f32 %v832, %v844
        %v851 = vadd.f32 %v833, %v845
        %vm852 = vcmp.gt.f32.partialorder %v686, 0.6681786
        %vm853 = vcmp.gt.f32.partialorder %v701, 0.6681786
        %vm854 = vcmp.gt.f32.partialorder %v716, 0.6681786
        %vm855 = vcmp.gt.f32.partialorder %v731, 0.6681786
        %vm856 = vcmp.gt.f32.partialorder %v746, 0.6681786
        %vm857 = vcmp.gt.f32.partialorder %v761, 0.6681786
        %v858 = vsel %vm852, 1.0, 0.0
        %v859 = vsel %vm853, 1.0, 0.0
        %v860 = vsel %vm854, 1.0, 0.0
        %v861 = vsel %vm855, 1.0, 0.0
        %v862 = vsel %vm856, 1.0, 0.0
        %v863 = vsel %vm857, 1.0, 0.0
        %v864 = vadd.f32 %v846, %v858
        %v865 = vadd.f32 %v847, %v859
        %v866 = vadd.f32 %v848, %v860
        %v867 = vadd.f32 %v849, %v861
        %v868 = vadd.f32 %v850, %v862
        %v869 = vadd.f32 %v851, %v863
        %vm870 = vcmp.gt.f32.partialorder %v686, 1.4966058
        %vm871 = vcmp.gt.f32.partialorder %v701, 1.4966058
        %vm872 = vcmp.gt.f32.partialorder %v716, 1.4966058
        %vm873 = vcmp.gt.f32.partialorder %v731, 1.4966058
        %vm874 = vcmp.gt.f32.partialorder %v746, 1.4966058
        %vm875 = vcmp.gt.f32.partialorder %v761, 1.4966058
        %v876 = vsel %vm870, 1.0, 0.0
        %v877 = vsel %vm871, 1.0, 0.0
        %v878 = vsel %vm872, 1.0, 0.0
        %v879 = vsel %vm873, 1.0, 0.0
        %v880 = vsel %vm874, 1.0, 0.0
        %v881 = vsel %vm875, 1.0, 0.0
        %v882 = vadd.f32 %v864, %v876
        %v883 = vadd.f32 %v865, %v877
        %v884 = vadd.f32 %v866, %v878
        %v885 = vadd.f32 %v867, %v879
        %v886 = vadd.f32 %v868, %v880
        %v887 = vadd.f32 %v869, %v881
        %vm888 = vcmp.gt.f32.partialorder %v686, 5.0273395
        %vm889 = vcmp.gt.f32.partialorder %v701, 5.0273395
        %vm890 = vcmp.gt.f32.partialorder %v716, 5.0273395
        %vm891 = vcmp.gt.f32.partialorder %v731, 5.0273395
        %vm892 = vcmp.gt.f32.partialorder %v746, 5.0273395
        %vm893 = vcmp.gt.f32.partialorder %v761, 5.0273395
        %v894 = vsel %vm888, 1.0, 0.0
        %v895 = vsel %vm889, 1.0, 0.0
        %v896 = vsel %vm890, 1.0, 0.0
        %v897 = vsel %vm891, 1.0, 0.0
        %v898 = vsel %vm892, 1.0, 0.0
        %v899 = vsel %vm893, 1.0, 0.0
        %v900 = vadd.f32 %v882, %v894
        %v901 = vadd.f32 %v883, %v895
        %v902 = vadd.f32 %v884, %v896
        %v903 = vadd.f32 %v885, %v897
        %v904 = vadd.f32 %v886, %v898
        %v905 = vadd.f32 %v887, %v899
        %vm906 = vcmp.eq.f32.partialorder %v900, 8.0
        %vm907 = vcmp.eq.f32.partialorder %v901, 8.0
        %vm908 = vcmp.eq.f32.partialorder %v902, 8.0
        %vm909 = vcmp.eq.f32.partialorder %v903, 8.0
        %vm910 = vcmp.eq.f32.partialorder %v904, 8.0
        %vm911 = vcmp.eq.f32.partialorder %v905, 8.0
        %v912 = vsel %vm906, 0.0, %v900
        %v913 = vsel %vm907, 0.0, %v901
        %v914 = vsel %vm908, 0.0, %v902
        %v915 = vsel %vm909, 0.0, %v903
        %v916 = vsel %vm910, 0.0, %v904
        %v917 = vsel %vm911, 0.0, %v905
        %vm918 = vcmp.ne.f32.partialorder %v686, %v686
        %vm919 = vcmp.ne.f32.partialorder %v701, %v701
        %vm920 = vcmp.ne.f32.partialorder %v716, %v716
        %vm921 = vcmp.ne.f32.partialorder %v731, %v731
        %vm922 = vcmp.ne.f32.partialorder %v746, %v746
        %vm923 = vcmp.ne.f32.partialorder %v761, %v761
        %v924 = vsel %vm918, -1.0, %v912
        %v925 = vsel %vm919, -1.0, %v913
        %v926 = vsel %vm920, -1.0, %v914
        %v927 = vsel %vm921, -1.0, %v915
        %v928 = vsel %vm922, -1.0, %v916
        %v929 = vsel %vm923, -1.0, %v917
        %v936 = vrot.slane %v611, 7
        %v937 = vrot.slane %v635, 7
        %v938 = vsel %vm187, %v936, %v937
        %v939 = vrot.slane %v623, 7
        %v940 = vrot.slane %v647, 7
        %v941 = vsel %vm187, %v939, %v940
        %v942 = vrot.slane %v659, 7
        %v943 = vsel %vm187, %v937, %v942
        %v944 = vrot.slane %v671, 7
        %v945 = vsel %vm187, %v940, %v944
        %946 = vrot.lane.b32.xlu0 %v938, 1
        %v947 = vpop.permute.xlu0 %946
        %948 = vrot.lane.b32.xlu0 %v941, 1
        %v949 = vpop.permute.xlu0 %948
        %950 = vrot.lane.b32.xlu0 %v943, 1
        %v951 = vpop.permute.xlu0 %950
        %952 = vrot.lane.b32.xlu0 %v945, 1
        %v953 = vpop.permute.xlu0 %952
        %v954 = vsel %vm206, %v947, %v949
        %v955 = vsel %vm206, %v951, %v953
        %958 = vst.msk [vmem:[#allocation2 + $0x18] sm:$0xff] %vm164, %v954
        %959 = vst.msk [vmem:[#allocation2 + $0x28] sm:$0xff] %vm164, %v955
        %v960 = vld [vmem:[#allocation2 + $0x18] sm:$0xff]
        %v961 = vld [vmem:[#allocation2 + $0x28] sm:$0xff]
        %v964 = vrot.slane %v960, 1
        %v965 = vrot.slane %v961, 1
        %v966 = vsel %vm282, %v964, %v965
        %967 = vrot.lane.b32.xlu0 %v964, 126
        %v968 = vpop.permute.xlu0 %967
        %969 = vrot.lane.b32.xlu0 %v966, 126
        %v970 = vpop.permute.xlu0 %969
        %971 = vrot.lane.b32.xlu0 %v965, 126
        %v972 = vpop.permute.xlu0 %971
        %v976 = vsub.f32 %v611, %v968
        %v977 = vsub.f32 %v623, %v968
        %v978 = vsub.f32 %v635, %v970
        %v979 = vsub.f32 %v647, %v970
        %v980 = vsub.f32 %v659, %v972
        %v981 = vsub.f32 %v671, %v972
        %v982 = vld [vmem:[#allocation2 + $0x10] sm:$0xff]
        %v983 = vld [vmem:[#allocation2 + $0x20] sm:$0xff]
        %v986 = vrot.slane %v982, 1
        %v987 = vrot.slane %v983, 1
        %v988 = vsel %vm282, %v986, %v987
        %v995 = vsub.f32 %v611, %v986
        %v996 = vsub.f32 %v623, %v964
        %v997 = vsub.f32 %v635, %v988
        %v998 = vsub.f32 %v647, %v966
        %v999 = vsub.f32 %v659, %v987
        %v1000 = vsub.f32 %v671, %v965
        %vm1001 = vcmp.eq.f32.partialorder %v924, 0.0
        %vm1002 = vcmp.eq.f32.partialorder %v925, 0.0
        %vm1003 = vcmp.eq.f32.partialorder %v926, 0.0
        %vm1004 = vcmp.eq.f32.partialorder %v927, 0.0
        %vm1005 = vcmp.eq.f32.partialorder %v928, 0.0
        %vm1006 = vcmp.eq.f32.partialorder %v929, 0.0
        %vm1007 = vcmp.eq.f32.partialorder %v924, 4.0
        %vm1008 = vcmp.eq.f32.partialorder %v925, 4.0
        %vm1009 = vcmp.eq.f32.partialorder %v926, 4.0
        %vm1010 = vcmp.eq.f32.partialorder %v927, 4.0
        %vm1011 = vcmp.eq.f32.partialorder %v928, 4.0
        %vm1012 = vcmp.eq.f32.partialorder %v929, 4.0
        %vm1013 = vmor %vm1001, %vm1007
        %vm1014 = vmor %vm1002, %vm1008
        %vm1015 = vmor %vm1003, %vm1009
        %vm1016 = vmor %vm1004, %vm1010
        %vm1017 = vmor %vm1005, %vm1011
        %vm1018 = vmor %vm1006, %vm1012
        %v1019 = vmin.f32 %v976, %v995
        %v1020 = vmin.f32 %v977, %v996
        %v1021 = vmin.f32 %v978, %v997
        %v1022 = vmin.f32 %v979, %v998
        %v1023 = vmin.f32 %v980, %v999
        %v1024 = vmin.f32 %v981, %v1000
        %vm1025 = vcmp.gt.f32.partialorder %v1019, 0.0
        %vm1026 = vcmp.gt.f32.partialorder %v1020, 0.0
        %vm1027 = vcmp.gt.f32.partialorder %v1021, 0.0
        %vm1028 = vcmp.gt.f32.partialorder %v1022, 0.0
        %vm1029 = vcmp.gt.f32.partialorder %v1023, 0.0
        %vm1030 = vcmp.gt.f32.partialorder %v1024, 0.0
        %vm1031 = vmxor %vm1025, 1
        %vm1032 = vmxor %vm1026, 1
        %vm1033 = vmxor %vm1027, 1
        %vm1034 = vmxor %vm1028, 1
        %vm1035 = vmxor %vm1029, 1
        %vm1036 = vmxor %vm1030, 1
        %vm1037 = vmand %vm1031, %vm1013
        %vm1038 = vmand %vm1032, %vm1014
        %vm1039 = vmand %vm1033, %vm1015
        %vm1040 = vmand %vm1034, %vm1016
        %vm1041 = vmand %vm1035, %vm1017
        %vm1042 = vmand %vm1036, %vm1018
        %v1043 = vsel %vm1037, 0.0, %v611
        %v1044 = vsel %vm1038, 0.0, %v623
        %v1045 = vsel %vm1039, 0.0, %v635
        %v1046 = vsel %vm1040, 0.0, %v647
        %v1047 = vsel %vm1041, 0.0, %v659
        %v1048 = vsel %vm1042, 0.0, %v671
        %v1049 = vld [vmem:[#allocation2 + $0x8] sm:$0x80]
        %v1050 = vld [vmem:[#allocation2 + $0x28] sm:$0x7f]
        %1053 = vrot.lane.b32.xlu0 %v1049, 126
        %v1054 = vpop.permute.xlu0 %1053
        %1055 = vrot.lane.b32.xlu0 %v960, 126
        %v1056 = vpop.permute.xlu0 %1055
        %1057 = vrot.lane.b32.xlu0 %v1050, 126
        %v1058 = vpop.permute.xlu0 %1057
        %v1062 = vsub.f32 %v611, %v1054
        %v1063 = vsub.f32 %v623, %v1054
        %v1064 = vsub.f32 %v635, %v1056
        %v1065 = vsub.f32 %v647, %v1056
        %v1066 = vsub.f32 %v659, %v1058
        %v1067 = vsub.f32 %v671, %v1058
        %v1068 = vld [vmem:[#allocation2 + $0x10] sm:$0xfe]
        %v1069 = vld [vmem:[#allocation2 + $0x18] sm:$0xfe]
        %v1070 = vld [vmem:[#allocation2 + $0x30] sm:$0x1]
        %v1071 = vld [vmem:[#allocation2 + $0x38] sm:$0x1]
        %v1076 = vrot.slane %v1068, 2
        %v1077 = vrot.slane %v1069, 2
        %v1078 = vrot.slane %v983, 2
        %v1079 = vsel %vm470, %v1076, %v1078
        %v1080 = vrot.slane %v961, 2
        %v1081 = vsel %vm470, %v1077, %v1080
        %v1082 = vrot.slane %v1070, 2
        %v1083 = vsel %vm470, %v1078, %v1082
        %v1084 = vrot.slane %v1071, 2
        %v1085 = vsel %vm470, %v1080, %v1084
        %v1092 = vsub.f32 %v611, %v1076
        %v1093 = vsub.f32 %v623, %v1077
        %v1094 = vsub.f32 %v635, %v1079
        %v1095 = vsub.f32 %v647, %v1081
        %v1096 = vsub.f32 %v659, %v1083
        %v1097 = vsub.f32 %v671, %v1085
        %vm1098 = vcmp.eq.f32.partialorder %v924, 1.0
        %vm1099 = vcmp.eq.f32.partialorder %v925, 1.0
        %vm1100 = vcmp.eq.f32.partialorder %v926, 1.0
        %vm1101 = vcmp.eq.f32.partialorder %v927, 1.0
        %vm1102 = vcmp.eq.f32.partialorder %v928, 1.0
        %vm1103 = vcmp.eq.f32.partialorder %v929, 1.0
        %vm1104 = vcmp.eq.f32.partialorder %v924, 5.0
        %vm1105 = vcmp.eq.f32.partialorder %v925, 5.0
        %vm1106 = vcmp.eq.f32.partialorder %v926, 5.0
        %vm1107 = vcmp.eq.f32.partialorder %v927, 5.0
        %vm1108 = vcmp.eq.f32.partialorder %v928, 5.0
        %vm1109 = vcmp.eq.f32.partialorder %v929, 5.0
        %vm1110 = vmor %vm1098, %vm1104
        %vm1111 = vmor %vm1099, %vm1105
        %vm1112 = vmor %vm1100, %vm1106
        %vm1113 = vmor %vm1101, %vm1107
        %vm1114 = vmor %vm1102, %vm1108
        %vm1115 = vmor %vm1103, %vm1109
        %v1116 = vmin.f32 %v1062, %v1092
        %v1117 = vmin.f32 %v1063, %v1093
        %v1118 = vmin.f32 %v1064, %v1094
        %v1119 = vmin.f32 %v1065, %v1095
        %v1120 = vmin.f32 %v1066, %v1096
        %v1121 = vmin.f32 %v1067, %v1097
        %vm1122 = vcmp.gt.f32.partialorder %v1116, 0.0
        %vm1123 = vcmp.gt.f32.partialorder %v1117, 0.0
        %vm1124 = vcmp.gt.f32.partialorder %v1118, 0.0
        %vm1125 = vcmp.gt.f32.partialorder %v1119, 0.0
        %vm1126 = vcmp.gt.f32.partialorder %v1120, 0.0
        %vm1127 = vcmp.gt.f32.partialorder %v1121, 0.0
        %vm1128 = vmxor %vm1122, 1
        %vm1129 = vmxor %vm1123, 1
        %vm1130 = vmxor %vm1124, 1
        %vm1131 = vmxor %vm1125, 1
        %vm1132 = vmxor %vm1126, 1
        %vm1133 = vmxor %vm1127, 1
        %vm1134 = vmand %vm1128, %vm1110
        %vm1135 = vmand %vm1129, %vm1111
        %vm1136 = vmand %vm1130, %vm1112
        %vm1137 = vmand %vm1131, %vm1113
        %vm1138 = vmand %vm1132, %vm1114
        %vm1139 = vmand %vm1133, %vm1115
        %v1140 = vsel %vm1134, 0.0, %v1043
        %v1141 = vsel %vm1135, 0.0, %v1044
        %v1142 = vsel %vm1136, 0.0, %v1045
        %v1143 = vsel %vm1137, 0.0, %v1046
        %v1144 = vsel %vm1138, 0.0, %v1047
        %v1145 = vsel %vm1139, 0.0, %v1048
        %1146 = vrot.lane.b32.xlu0 %v1049, 127
        %v1147 = vpop.permute.xlu0 %1146
        %1148 = vrot.lane.b32.xlu0 %v960, 127
        %v1149 = vpop.permute.xlu0 %1148
        %1150 = vrot.lane.b32.xlu0 %v1050, 127
        %v1151 = vpop.permute.xlu0 %1150
        %v1155 = vsub.f32 %v611, %v1147
        %v1156 = vsub.f32 %v623, %v1147
        %v1157 = vsub.f32 %v635, %v1149
        %v1158 = vsub.f32 %v647, %v1149
        %v1159 = vsub.f32 %v659, %v1151
        %v1160 = vsub.f32 %v671, %v1151
        %1161 = vrot.lane.b32.xlu0 %v1077, 127
        %v1162 = vpop.permute.xlu0 %1161
        %1163 = vrot.lane.b32.xlu0 %v1081, 127
        %v1164 = vpop.permute.xlu0 %1163
        %1165 = vrot.lane.b32.xlu0 %v1085, 127
        %v1166 = vpop.permute.xlu0 %1165
        %v1170 = vsub.f32 %v611, %v1162
        %v1171 = vsub.f32 %v623, %v1162
        %v1172 = vsub.f32 %v635, %v1164
        %v1173 = vsub.f32 %v647, %v1164
        %v1174 = vsub.f32 %v659, %v1166
        %v1175 = vsub.f32 %v671, %v1166
        %vm1176 = vcmp.eq.f32.partialorder %v924, 2.0
        %vm1177 = vcmp.eq.f32.partialorder %v925, 2.0
        %vm1178 = vcmp.eq.f32.partialorder %v926, 2.0
        %vm1179 = vcmp.eq.f32.partialorder %v927, 2.0
        %vm1180 = vcmp.eq.f32.partialorder %v928, 2.0
        %vm1181 = vcmp.eq.f32.partialorder %v929, 2.0
        %vm1182 = vcmp.eq.f32.partialorder %v924, 6.0
        %vm1183 = vcmp.eq.f32.partialorder %v925, 6.0
        %vm1184 = vcmp.eq.f32.partialorder %v926, 6.0
        %vm1185 = vcmp.eq.f32.partialorder %v927, 6.0
        %vm1186 = vcmp.eq.f32.partialorder %v928, 6.0
        %vm1187 = vcmp.eq.f32.partialorder %v929, 6.0
        %vm1188 = vmor %vm1176, %vm1182
        %vm1189 = vmor %vm1177, %vm1183
        %vm1190 = vmor %vm1178, %vm1184
        %vm1191 = vmor %vm1179, %vm1185
        %vm1192 = vmor %vm1180, %vm1186
        %vm1193 = vmor %vm1181, %vm1187
        %v1194 = vmin.f32 %v1155, %v1170
        %v1195 = vmin.f32 %v1156, %v1171
        %v1196 = vmin.f32 %v1157, %v1172
        %v1197 = vmin.f32 %v1158, %v1173
        %v1198 = vmin.f32 %v1159, %v1174
        %v1199 = vmin.f32 %v1160, %v1175
        %vm1200 = vcmp.gt.f32.partialorder %v1194, 0.0
        %vm1201 = vcmp.gt.f32.partialorder %v1195, 0.0
        %vm1202 = vcmp.gt.f32.partialorder %v1196, 0.0
        %vm1203 = vcmp.gt.f32.partialorder %v1197, 0.0
        %vm1204 = vcmp.gt.f32.partialorder %v1198, 0.0
        %vm1205 = vcmp.gt.f32.partialorder %v1199, 0.0
        %vm1206 = vmxor %vm1200, 1
        %vm1207 = vmxor %vm1201, 1
        %vm1208 = vmxor %vm1202, 1
        %vm1209 = vmxor %vm1203, 1
        %vm1210 = vmxor %vm1204, 1
        %vm1211 = vmxor %vm1205, 1
        %vm1212 = vmand %vm1206, %vm1188
        %vm1213 = vmand %vm1207, %vm1189
        %vm1214 = vmand %vm1208, %vm1190
        %vm1215 = vmand %vm1209, %vm1191
        %vm1216 = vmand %vm1210, %vm1192
        %vm1217 = vmand %vm1211, %vm1193
        %v1218 = vsel %vm1212, 0.0, %v1140
        %v1219 = vsel %vm1213, 0.0, %v1141
        %v1220 = vsel %vm1214, 0.0, %v1142
        %v1221 = vsel %vm1215, 0.0, %v1143
        %v1222 = vsel %vm1216, 0.0, %v1144
        %v1223 = vsel %vm1217, 0.0, %v1145
        %v1224 = vld [vmem:[#allocation2] sm:$0x80]
        %v1225 = vld [vmem:[#allocation2 + $0x20] sm:$0x7f]
        %v1226 = vsub.f32 %v611, %v1224
        %v1227 = vsub.f32 %v623, %v1049
        %v1228 = vsub.f32 %v635, %v982
        %v1229 = vsub.f32 %v647, %v960
        %v1230 = vsub.f32 %v659, %v1225
        %v1231 = vsub.f32 %v671, %v1050
        %1232 = vrot.lane.b32.xlu0 %v1077, 126
        %v1233 = vpop.permute.xlu0 %1232
        %1234 = vrot.lane.b32.xlu0 %v1081, 126
        %v1235 = vpop.permute.xlu0 %1234
        %1236 = vrot.lane.b32.xlu0 %v1085, 126
        %v1237 = vpop.permute.xlu0 %1236
        %v1241 = vsub.f32 %v611, %v1233
        %v1242 = vsub.f32 %v623, %v1233
        %v1243 = vsub.f32 %v635, %v1235
        %v1244 = vsub.f32 %v647, %v1235
        %v1245 = vsub.f32 %v659, %v1237
        %v1246 = vsub.f32 %v671, %v1237
        %vm1247 = vcmp.eq.f32.partialorder %v924, 3.0
        %vm1248 = vcmp.eq.f32.partialorder %v925, 3.0
        %vm1249 = vcmp.eq.f32.partialorder %v926, 3.0
        %vm1250 = vcmp.eq.f32.partialorder %v927, 3.0
        %vm1251 = vcmp.eq.f32.partialorder %v928, 3.0
        %vm1252 = vcmp.eq.f32.partialorder %v929, 3.0
        %vm1253 = vcmp.eq.f32.partialorder %v924, 7.0
        %vm1254 = vcmp.eq.f32.partialorder %v925, 7.0
        %vm1255 = vcmp.eq.f32.partialorder %v926, 7.0
        %vm1256 = vcmp.eq.f32.partialorder %v927, 7.0
        %vm1257 = vcmp.eq.f32.partialorder %v928, 7.0
        %vm1258 = vcmp.eq.f32.partialorder %v929, 7.0
        %vm1259 = vmor %vm1247, %vm1253
        %vm1260 = vmor %vm1248, %vm1254
        %vm1261 = vmor %vm1249, %vm1255
        %vm1262 = vmor %vm1250, %vm1256
        %vm1263 = vmor %vm1251, %vm1257
        %vm1264 = vmor %vm1252, %vm1258
        %v1265 = vmin.f32 %v1226, %v1241
        %v1266 = vmin.f32 %v1227, %v1242
        %v1267 = vmin.f32 %v1228, %v1243
        %v1268 = vmin.f32 %v1229, %v1244
        %v1269 = vmin.f32 %v1230, %v1245
        %v1270 = vmin.f32 %v1231, %v1246
        %vm1271 = vcmp.gt.f32.partialorder %v1265, 0.0
        %vm1272 = vcmp.gt.f32.partialorder %v1266, 0.0
        %vm1273 = vcmp.gt.f32.partialorder %v1267, 0.0
        %vm1274 = vcmp.gt.f32.partialorder %v1268, 0.0
        %vm1275 = vcmp.gt.f32.partialorder %v1269, 0.0
        %vm1276 = vcmp.gt.f32.partialorder %v1270, 0.0
        %vm1277 = vmxor %vm1271, 1
        %vm1278 = vmxor %vm1272, 1
        %vm1279 = vmxor %vm1273, 1
        %vm1280 = vmxor %vm1274, 1
        %vm1281 = vmxor %vm1275, 1
        %vm1282 = vmxor %vm1276, 1
        %vm1283 = vmand %vm1277, %vm1259
        %vm1284 = vmand %vm1278, %vm1260
        %vm1285 = vmand %vm1279, %vm1261
        %vm1286 = vmand %vm1280, %vm1262
        %vm1287 = vmand %vm1281, %vm1263
        %vm1288 = vmand %vm1282, %vm1264
        %v1289 = vsel %vm1283, 0.0, %v1218
        %v1290 = vsel %vm1284, 0.0, %v1219
        %v1291 = vsel %vm1285, 0.0, %v1220
        %v1292 = vsel %vm1286, 0.0, %v1221
        %v1293 = vsel %vm1287, 0.0, %v1222
        %v1294 = vsel %vm1288, 0.0, %v1223
        %1301 = vrot.lane.b32.xlu0 %v1289, 1
        %v1302 = vpop.permute.xlu0 %1301
        %1303 = vrot.lane.b32.xlu0 %v1290, 1
        %v1304 = vpop.permute.xlu0 %1303
        %1305 = vrot.lane.b32.xlu0 %v1291, 1
        %v1306 = vpop.permute.xlu0 %1305
        %1307 = vrot.lane.b32.xlu0 %v1292, 1
        %v1308 = vpop.permute.xlu0 %1307
        %1309 = vrot.lane.b32.xlu0 %v1293, 1
        %v1310 = vpop.permute.xlu0 %1309
        %1311 = vrot.lane.b32.xlu0 %v1294, 1
        %v1312 = vpop.permute.xlu0 %1311
        %v1313 = vsel %vm206, %v1302, %v1304
        %v1314 = vsel %vm206, %v1306, %v1308
        %v1315 = vsel %vm206, %v1310, %v1312
        %vm1319 = vcmask 130055
        %1320 = vst.msk [vmem:[%s136 - $0x7] sm:$0x80] %vm1319, %v1313
        %1321 = vst.msk [vmem:[%s136 + $0x1] sm:$0xff] %vm164, %v1314
        %vm1322 = vcmask 129024
        %1323 = vst.msk [vmem:[%s136 + $0x9] sm:$0x7f] %vm1322, %v1315
        %s1324 = sand.u32 %s52, 1
        %s1325 = scalar_lea.sflag [#allocation5], %s1324
        %s1326 = sand.u32 %s52, 1
        %s1327 = smul.addr %s1326, 16
        %s1328 = scalar_lea.vmem [#allocation6], %s1327
        // Predicated region
        $region29: #{tpu_custom_call.1} parent=23 // pred_check
          %p1329 = pneg %p62
        $region30: #{tpu_custom_call.1} parent=23 // pred_check_branch
          %1331 = sbr.rel (%p1329) target = $region32
        $region31: #{tpu_custom_call.1} parent=23 // pred_region
          %1333 = vsyncadd %s1325, 0
          %s1334 = smul.addr %s18, 2
          %s1335 = smul.addr %s1334, 8
          %s1336 = scalar_lea.hbm %s1, %s1335
          %s1337 = sshll.u32 %s1328, 4
          %s1338 = int_to_ptr.vmem [resolvable:$true] %s1337
          %s1339 = sshll.u32 %s1336, 4
          %s1340 = int_to_ptr.hbm [resolvable:$true] %s1339
          %1345 = dma.vmem_to_hbm [thread:$0]  %s1338, 256, %s1340, %s1325, 128, 128, 8
        $region32: #{tpu_custom_call.1} parent=23 // pred_fallthru
          _
      $region24: #{tpu_custom_call.1} parent=5 // pred_fallthru
        _
      %p1346 = scmp.le.s32.totalorder 2, %s13
      // Predicated region
      $region33: #{tpu_custom_call.1} parent=5 // pred_check
        %p1347 = pneg %p1346
      $region34: #{tpu_custom_call.1} parent=5 // pred_check_branch
        %1349 = sbr.rel (%p1347) target = $region36
      $region35: #{tpu_custom_call.1} parent=5 // pred_region
        %s1350 = ssub.s32 %s13, 2
        // Predicated region
        $region37: #{tpu_custom_call.1} parent=35 // pred_check
          %p1351 = pneg %p68
        $region38: #{tpu_custom_call.1} parent=35 // pred_check_branch
          %1353 = sbr.rel (%p1351) target = $region40
        $region39: #{tpu_custom_call.1} parent=35 // pred_region
          %s1354 = sand.u32 %s53, 1
          %s1355 = scalar_lea.sflag [#allocation5], %s1354
          %s1356 = sand.u32 %s53, 1
          %s1357 = smul.addr %s1356, 16
          %s1358 = scalar_lea.vmem [#allocation6], %s1357
          %1360 = dma.done %s1355, 256
        $region40: #{tpu_custom_call.1} parent=35 // pred_fallthru
          _
      $region36: #{tpu_custom_call.1} parent=5 // pred_fallthru
        _
    $region6: #{tpu_custom_call.1} parent=1 // loop_footer
      %s17 = sadd.s32 1, %s13
    $region7: #{tpu_custom_call.1} parent=1 // loop_footer_branch
      %12 = sbr.rel target = $region3
    $region8: #{tpu_custom_call.1} parent=1 // loop_exit
      _
    %1361 = vsyncpa [#allocation4], 1
    %s1362 = scalar_lea.sflag [#allocation4], 1
    %1363 = vsyncpa %s1362, 1
    %1364 = vsyncpa [#allocation5], 1
    %s1365 = scalar_lea.sflag [#allocation5], 1
    %1366 = vsyncpa %s1365, 1

</llo_original>
